<compile_context>
chip_gen: v6e
topology: v6e:2x2x1
jax: 0.10.0
libtpu: 0.0.40
codegen_flags: <defaults>
</compile_context>

<pallas_src>
import math
import numpy as np
import jax
import jax.numpy as jnp
from jax.experimental import pallas as pl
from jax.experimental.pallas import tpu as pltpu

NUM_JOINTS = 16
NUM_VERTS = 778
NUM_BETAS = 10
NUM_POSE = 45
NUM_POSE_FEAT = 9 * (NUM_JOINTS - 1)      # 135
K_PAD = 144                               # 135 -> 144; row 135 = folded v_shaped, 136..143 zero


def _detect_tiling():
    # One vertex tile per TensorCore: v7x has 2 TCs/chip -> 2x512 lanes;
    # v5e/v6e are single-TC -> one 896 (=7*128) lane tile (least posedirs DMA).
    try:
        kind = jax.devices()[0].device_kind.lower()
    except Exception:
        kind = ""
    if "v7" in kind:
        return 2, 512
    return 1, 896


N_TILES, TILE_V = _detect_tiling()
V_PAD = N_TILES * TILE_V                  # >= 778, multiple of 128

PARENTS = np.array([-1, 0, 1, 2, 0, 4, 5, 0, 7, 8, 0, 10, 11, 0, 13, 14], dtype=np.int32)
TIP_IDS = np.array([745, 317, 445, 556, 673], dtype=np.int32)

MANO_SHAPE = [-0.2958, 0.9205, -0.3387, -2.2807, -0.8466,
              -1.171, -2.0076, 1.6172, -0.9288, 0.4104]

POSE_LB = (np.array([0, -0.1, -0.0, 0, 0, 0, 0, 0, 0,
                     0, -0.1, -0.0, 0, 0, 0, 0, 0, 0,
                     0, -0.1, -0.0, 0, 0, 0, 0, 0, 0,
                     0, -0.1, -0.0, 0, 0, 0, 0, 0, 0,
                     0, -0.25, -0.15, 0, 0, 0, 0, 0, 0], dtype=np.float32) * math.pi
           ).astype(np.float32)
POSE_UB = (np.array([0, 0.1, 0.5, 0, 0, 0.5, 0, 0, 0.5,
                     0, 0.1, 0.5, 0, 0, 0.5, 0, 0, 0.5,
                     0, 0.1, 0.5, 0, 0, 0.5, 0, 0, 0.5,
                     0, 0.1, 0.5, 0, 0, 0.5, 0, 0, 0.5,
                     0, 0.25, 0.25, 0, 0, 0.25, 0, 0, 0.5], dtype=np.float32) * math.pi
           ).astype(np.float32)
assert POSE_LB.shape == (45,) and POSE_UB.shape == (45,)


# ------------------------------------------------------------------ kernel --

def fused_blend_lbs_kernel(pf_ref, a_ref, pd_ref, wt_ref, out_ref):
    """Fused pose-blendshapes + linear blend skinning for one vertex tile.

    pf_ref : (B*3, K_PAD)        bf16 pose feature (R - I), col 135 == 1.0 (bias)
    a_ref  : (4*B*3, 16)         f32 skinning transforms, a[c*B3 + b*3 + r, j] = A[b,j,r,c]
    pd_ref : (K_PAD, 3*TILE_V)   bf16 posedirs (coord blocks x|y|z), row 135 = v_shaped
    wt_ref : (16, TILE_V)        f32 LBS weights transposed
    out_ref: (B*3, TILE_V)       row b*3 + r = coordinate r of batch b
    """
    B3 = out_ref.shape[0]
    TV = out_ref.shape[1]

    # one MXU pass: v_posed for all 3 coordinates, +v_shaped folded via the
    # ones column of pf against the v_shaped row of pd.
    vp = jnp.dot(pf_ref[...], pd_ref[...],
                 preferred_element_type=jnp.float32)            # (B3, 3*TV)

    # per-vertex skinning transforms: T[c*B3 + b*3 + r, v] == T_full[b, v][r, c]
    T = jnp.dot(a_ref[...], wt_ref[...],
                preferred_element_type=jnp.float32)             # (4*B3, TV)

    # affine apply: 4 lane-dense FMAs, one full-block store.
    out_ref[...] = (T[0 * B3:1 * B3] * vp[:, 0 * TV:1 * TV]
                    + T[1 * B3:2 * B3] * vp[:, 1 * TV:2 * TV]
                    + T[2 * B3:3 * B3] * vp[:, 2 * TV:3 * TV]
                    + T[3 * B3:4 * B3])


def fused_blend_lbs(pf3, a_st, pd_kv, w_t):
    B3 = pf3.shape[0]
    flops = (2 * B3 * K_PAD * 3 * V_PAD            # pose-blend matmul
             + 2 * 4 * B3 * NUM_JOINTS * V_PAD     # skinning-transform matmul
             + 7 * B3 * V_PAD)                     # affine apply
    bytes_accessed = (pd_kv.size * 2 + w_t.size * 4 + pf3.size * 2
                      + a_st.size * 4 + B3 * V_PAD * 4)
    return pl.pallas_call(
        fused_blend_lbs_kernel,
        out_shape=jax.ShapeDtypeStruct((B3, V_PAD), jnp.float32),
        grid=(N_TILES,),
        in_specs=[
            pl.BlockSpec((B3, K_PAD), lambda t: (0, 0)),                 # resident
            pl.BlockSpec((4 * B3, NUM_JOINTS), lambda t: (0, 0)),        # resident
            pl.BlockSpec((K_PAD, 3 * TILE_V), lambda t: (0, t)),         # bf16 posedirs tile
            pl.BlockSpec((NUM_JOINTS, TILE_V), lambda t: (0, t)),        # weights tile
        ],
        out_specs=pl.BlockSpec((B3, TILE_V), lambda t: (0, t)),
        compiler_params=pltpu.CompilerParams(
            dimension_semantics=("parallel",)),
        cost_estimate=pl.CostEstimate(flops=int(flops), transcendentals=0,
                                      bytes_accessed=int(bytes_accessed)),
    )(pf3, a_st, pd_kv, w_t)


# --------------------------------------------------------------------- glue --

def rodrigues(rvec):
    """Axis-angle (..., 3) -> rotation matrices (..., 3, 3)."""
    angle = jnp.sqrt(jnp.sum(rvec * rvec, axis=-1, keepdims=True) + 1e-12)
    axis = rvec / angle
    ca = jnp.cos(angle)[..., None]
    sa = jnp.sin(angle)[..., None]
    ax, ay, az = axis[..., 0], axis[..., 1], axis[..., 2]
    zeros = jnp.zeros_like(ax)
    K = jnp.stack([zeros, -az, ay,
                   az, zeros, -ax,
                   -ay, ax, zeros], axis=-1).reshape(axis.shape[:-1] + (3, 3))
    outer = axis[..., :, None] * axis[..., None, :]
    eye = jnp.eye(3, dtype=rvec.dtype)
    return ca * eye + (1.0 - ca) * outer + sa * K


def rigid_transform(rot_mats, joints):
    """Forward kinematics over the 16-joint MANO tree (tiny -> plain JAX)."""
    B = rot_mats.shape[0]
    rel = joints.at[1:].set(joints[1:] - joints[PARENTS[1:]])                # (16,3)
    top = jnp.concatenate(
        [rot_mats, jnp.broadcast_to(rel[None, :, :, None], (B, NUM_JOINTS, 3, 1))], axis=-1)
    bottom = jnp.broadcast_to(jnp.array([0., 0., 0., 1.], jnp.float32),
                              (B, NUM_JOINTS, 1, 4))
    tm = jnp.concatenate([top, bottom], axis=-2)                             # (B,16,4,4)
    chain = [tm[:, 0]]
    for j in range(1, NUM_JOINTS):
        chain.append(jnp.matmul(chain[int(PARENTS[j])], tm[:, j]))
    G = jnp.stack(chain, axis=1)                                             # (B,16,4,4)
    rot_j = jnp.einsum('bjmn,jn->bjm', G[:, :, :3, :3], joints)              # (B,16,3)
    A = G.at[:, :, :3, 3].add(-rot_j)                                        # relative transforms
    return G, A


def init_params(key):
    ks = jax.random.split(key, 6)
    v_template = jax.random.normal(ks[0], (NUM_VERTS, 3), jnp.float32) * 0.01
    shapedirs = jax.random.normal(ks[1], (NUM_VERTS, 3, NUM_BETAS), jnp.float32) * 1e-3
    posedirs = jax.random.normal(ks[2], (NUM_VERTS, 3, NUM_POSE_FEAT), jnp.float32) * 1e-4
    j_regressor = jax.nn.softmax(
        jax.random.normal(ks[3], (NUM_JOINTS, NUM_VERTS), jnp.float32), axis=-1)
    lbs_weights = jax.nn.softmax(
        jax.random.normal(ks[4], (NUM_VERTS, NUM_JOINTS), jnp.float32) * 2.0, axis=-1)

    # synthetic per-joint twist/spread/bend axes; joint 0 = identity axes,
    # matching the torch module's prepended [1,0,0]/[0,1,0]/[0,0,1].
    raw_axis = jax.random.normal(ks[5], (NUM_JOINTS, 3, 3), jnp.float32)
    raw_axis = raw_axis / jnp.linalg.norm(raw_axis, axis=-1, keepdims=True)
    axis = raw_axis.at[0].set(jnp.eye(3, dtype=jnp.float32))                 # (16,3,3)

    shape_param = jnp.asarray(MANO_SHAPE, jnp.float32).reshape(1, NUM_BETAS)

    # --- betas-only subgraph hoisted out of the per-call path -----------------
    # NOTE: only valid while betas never become per-sample inputs.
    v_shaped = v_template + jnp.einsum('vck,k->vc', shapedirs, shape_param[0])   # (778,3)
    joints_rest = jnp.dot(j_regressor, v_shaped)                                 # (16,3)

    # --- bf16, tile-major combined posedirs constant for the kernel -----------
    # pd_kv[k, t*3*TILE_V + c*TILE_V + vl] = posedirs[v, c, k]   (k < 135)
    # row k = 135 of each coordinate block holds v_shaped (bias folded via a
    # ones column of the pose feature); rows 136..143 and lanes >= 778 are zero.
    pd = jnp.transpose(posedirs, (1, 2, 0))                                      # (3,135,778)
    pd = jnp.pad(pd, ((0, 0), (0, K_PAD - NUM_POSE_FEAT), (0, V_PAD - NUM_VERTS)))
    pd = pd.at[:, NUM_POSE_FEAT, :NUM_VERTS].set(v_shaped.T)                     # (3,144,V_PAD)
    pd = pd.reshape(3, K_PAD, N_TILES, TILE_V)
    pd_kv = jnp.transpose(pd, (1, 2, 0, 3)).reshape(K_PAD, N_TILES * 3 * TILE_V)
    pd_kv = pd_kv.astype(jnp.bfloat16)

    # LBS weights stay f32 (tiny DMA; keeps skinning-transform precision).
    w_t = jnp.pad(lbs_weights.T, ((0, 0), (0, V_PAD - NUM_VERTS)))               # (16, V_PAD)

    return dict(
        axis=axis,
        shape_param=shape_param,
        pose_lb=jnp.asarray(POSE_LB),
        pose_ub=jnp.asarray(POSE_UB),
        joints_rest=joints_rest,
        pd_kv=pd_kv,
        w_t=w_t,
    )


def _pose_and_transforms(params, rot, pose):
    """to_original_mano + Rodrigues + forward kinematics (plain-JAX glue)."""
    B = rot.shape[0]
    real_pose = (jax.nn.sigmoid(pose) * (params["pose_ub"] - params["pose_lb"])
                 + params["pose_lb"])
    pose_coeffs = jnp.concatenate([rot, real_pose], axis=1).reshape(B, NUM_JOINTS, 1, 3)
    new_axis = jnp.matmul(pose_coeffs, params["axis"]).reshape(B, 48)
    rot_mats = rodrigues(new_axis.reshape(B, NUM_JOINTS, 3))                 # (B,16,3,3)
    pose_feature = (rot_mats[:, 1:] - jnp.eye(3, dtype=jnp.float32)).reshape(B, NUM_POSE_FEAT)
    G, A = rigid_transform(rot_mats, params["joints_rest"])
    return new_axis, pose_feature, G, A


def mano_forward(params, rot, pose):
    # NOTE: B is flexible -- batching more poses per call amortizes the constant
    # posedirs DMA and launch overhead almost for free (biggest throughput lever).
    B = rot.shape[0]
    new_axis, pose_feature, G, A = _pose_and_transforms(params, rot, pose)
    shapes = jnp.tile(params["shape_param"], (B, 1))                         # (B,10)

    # pose feature padded to K_PAD with a ones column at k=135 (folds +v_shaped
    # into the matmul), replicated per output coordinate row, cast to bf16.
    pf_pad = jnp.pad(pose_feature, ((0, 0), (0, K_PAD - NUM_POSE_FEAT)))     # (B,144)
    pf_pad = pf_pad.at[:, NUM_POSE_FEAT].set(1.0)
    pf3 = jnp.repeat(pf_pad, 3, axis=0).astype(jnp.bfloat16)                 # (B*3,144)

    # skinning transforms repacked: a_st[c*B*3 + b*3 + r, j] = A[b, j, r, c]
    a_st = jnp.transpose(A, (3, 0, 2, 1))[:, :, :3, :].reshape(4 * B * 3, NUM_JOINTS)

    verts_t = fused_blend_lbs(pf3, a_st, params["pd_kv"], params["w_t"])     # (B*3,V_PAD)

    # fingertips gathered from the lane-dense layout before the (B,V,3) relayout
    tips = verts_t[:, TIP_IDS].reshape(B, 3, len(TIP_IDS)).transpose(0, 2, 1)    # (B,5,3)

    verts = jnp.transpose(verts_t.reshape(B, 3, V_PAD), (0, 2, 1))[:, :NUM_VERTS, :]

    joints = G[:, :, :3, 3]                                                  # (B,16,3)
    # TODO(synk): manotorch appends fingertip vertices and reorders joints per
    # its own convention; here tips are simply appended after the 16 joints.
    joints21 = jnp.concatenate([joints, tips], axis=1)                       # (B,21,3)

    return {
        "verts": verts,
        "joints": joints21,
        "transforms_abs": G,
        "full_poses": new_axis,
        "betas": shapes,
    }


# ----------------------------------------------------------------- testing --

def _unpack_constants(params):
    """Invert the tile-major bf16 posedirs layout for the pure-JAX reference."""
    pd = params["pd_kv"].astype(jnp.float32).reshape(K_PAD, N_TILES, 3, TILE_V)
    pd = jnp.transpose(pd, (2, 0, 1, 3)).reshape(3, K_PAD, V_PAD)
    posedirs = pd[:, :NUM_POSE_FEAT, :NUM_VERTS]                             # (3,135,778)
    v_shaped = pd[:, NUM_POSE_FEAT, :NUM_VERTS].T                            # (778,3)
    return posedirs, v_shaped


def _verts_reference(params, pose_feature, A):
    """Plain-JAX reference of the fused pose-blendshape + LBS kernel."""
    pd, v_shaped = _unpack_constants(params)
    v_posed = v_shaped[None] + jnp.einsum('bk,ckv->bvc', pose_feature, pd)   # (B,778,3)
    W = params["w_t"][:, :NUM_VERTS].T                                       # (778,16)
    T = jnp.einsum('vj,bjrc->bvrc', W, A)                                    # (B,778,4,4)
    return jnp.einsum('bvrc,bvc->bvr', T[:, :, :3, :3], v_posed) + T[:, :, :3, 3]


if __name__ == "__main__":
    params = init_params(jax.random.PRNGKey(0))
    kr, kp = jax.random.split(jax.random.PRNGKey(0))
    rot = jax.random.normal(kr, (2, 3), jnp.float32) * 0.1
    pose = jax.random.normal(kp, (2, NUM_POSE), jnp.float32)

    fwd = jax.jit(mano_forward)
    out = jax.block_until_ready(fwd(params, rot, pose))

    assert out["verts"].shape == (2, NUM_VERTS, 3)
    assert out["joints"].shape == (2, 21, 3)
    assert out["full_poses"].shape == (2, 48)
    assert out["transforms_abs"].shape == (2, NUM_JOINTS, 4, 4)
    assert out["betas"].shape == (2, NUM_BETAS)

    # correctness check of the fused Pallas path vs a pure-JAX reference
    _, pose_feature, _, A = _pose_and_transforms(params, rot, pose)
    verts_ref = _verts_reference(params, pose_feature, A)
    max_err = float(jnp.max(jnp.abs(out["verts"] - verts_ref)))
    assert max_err < 1e-3, max_err

    print("KERNEL_OK")
</pallas_src>

<mosaic_0001>
module attributes {stable_mosaic.version = 11 : i64} {
  func.func @fused_blend_lbs_kernel(%arg0: i32, %arg1: memref<6x144xbf16, #tpu.memory_space<vmem>>, %arg2: memref<24x16xf32, #tpu.memory_space<vmem>>, %arg3: memref<144x2688xbf16, #tpu.memory_space<vmem>>, %arg4: memref<16x896xf32, #tpu.memory_space<vmem>>, %arg5: memref<6x896xf32, #tpu.memory_space<vmem>>) attributes {dimension_semantics = [#tpu.dimension_semantics<parallel>], iteration_bounds = array<i64: 1>, scalar_prefetch = 0 : i64, scratch_operands = 0 : i64, tpu.core_type = #tpu.core_type<tc>, window_params = [{pipeline_mode = #tpu.pipeline_mode<synchronous>, transform_indices = @transform_0, window_bounds = array<i64: 6, 144>}, {pipeline_mode = #tpu.pipeline_mode<synchronous>, transform_indices = @transform_1, window_bounds = array<i64: 24, 16>}, {transform_indices = @transform_2, window_bounds = array<i64: 144, 2688>}, {transform_indices = @transform_3, window_bounds = array<i64: 16, 896>}, {transform_indices = @transform_4, window_bounds = array<i64: 6, 896>}]} {
    %c0 = arith.constant 0 : index
    %c0_0 = arith.constant 0 : index
    %0 = vector.load %arg1[%c0, %c0_0] : memref<6x144xbf16, #tpu.memory_space<vmem>>, vector<6x144xbf16>
    %c0_1 = arith.constant 0 : index
    %c0_2 = arith.constant 0 : index
    %1 = vector.load %arg3[%c0_1, %c0_2] : memref<144x2688xbf16, #tpu.memory_space<vmem>>, vector<144x2688xbf16>
    %cst = arith.constant dense<0.000000e+00> : vector<6x2688xf32>
    %2 = tpu.matmul %0, %1, %cst {dimension_numbers = #tpu.dot_dimension_numbers<[1], [0], [0], [1], [0, 0, 1, 1], [], []>} : vector<6x144xbf16>, vector<144x2688xbf16>, vector<6x2688xf32> -> vector<6x2688xf32>
    %c0_3 = arith.constant 0 : index
    %c0_4 = arith.constant 0 : index
    %3 = vector.load %arg2[%c0_3, %c0_4] : memref<24x16xf32, #tpu.memory_space<vmem>>, vector<24x16xf32>
    %c0_5 = arith.constant 0 : index
    %c0_6 = arith.constant 0 : index
    %4 = vector.load %arg4[%c0_5, %c0_6] : memref<16x896xf32, #tpu.memory_space<vmem>>, vector<16x896xf32>
    %cst_7 = arith.constant dense<0.000000e+00> : vector<24x896xf32>
    %5 = tpu.matmul %3, %4, %cst_7 {dimension_numbers = #tpu.dot_dimension_numbers<[1], [0], [0], [1], [0, 0, 1, 1], [], []>} : vector<24x16xf32>, vector<16x896xf32>, vector<24x896xf32> -> vector<24x896xf32>
    %6 = vector.extract_strided_slice %5 {offsets = [0, 0], sizes = [6, 896], strides = [1, 1]} : vector<24x896xf32> to vector<6x896xf32>
    %7 = vector.extract_strided_slice %2 {offsets = [0, 0], sizes = [6, 896], strides = [1, 1]} : vector<6x2688xf32> to vector<6x896xf32>
    %8 = arith.mulf %6, %7 : vector<6x896xf32>
    %9 = vector.extract_strided_slice %5 {offsets = [6, 0], sizes = [6, 896], strides = [1, 1]} : vector<24x896xf32> to vector<6x896xf32>
    %10 = vector.extract_strided_slice %2 {offsets = [0, 896], sizes = [6, 896], strides = [1, 1]} : vector<6x2688xf32> to vector<6x896xf32>
    %11 = arith.mulf %9, %10 : vector<6x896xf32>
    %12 = arith.addf %8, %11 : vector<6x896xf32>
    %13 = vector.extract_strided_slice %5 {offsets = [12, 0], sizes = [6, 896], strides = [1, 1]} : vector<24x896xf32> to vector<6x896xf32>
    %14 = vector.extract_strided_slice %2 {offsets = [0, 1792], sizes = [6, 896], strides = [1, 1]} : vector<6x2688xf32> to vector<6x896xf32>
    %15 = arith.mulf %13, %14 : vector<6x896xf32>
    %16 = arith.addf %12, %15 : vector<6x896xf32>
    %17 = vector.extract_strided_slice %5 {offsets = [18, 0], sizes = [6, 896], strides = [1, 1]} : vector<24x896xf32> to vector<6x896xf32>
    %18 = arith.addf %16, %17 : vector<6x896xf32>
    %c0_8 = arith.constant 0 : index
    %c0_9 = arith.constant 0 : index
    %19 = vector.load %arg5[%c0_8, %c0_9] : memref<6x896xf32, #tpu.memory_space<vmem>>, vector<6x896xf32>
    tpu.vector_store %arg5[%c0_8, %c0_9], %18 {strides = array<i32>} : memref<6x896xf32, #tpu.memory_space<vmem>>, vector<6x896xf32>,
    return
  }
  func.func @transform_0(%arg0: i32) -> (i32, i32) {
    %c0_i32 = arith.constant 0 : i32
    %c0_i32_0 = arith.constant 0 : i32
    %c0_i32_1 = arith.constant 0 : i32
    return %c0_i32, %c0_i32_0 : i32, i32
  }
  func.func @transform_1(%arg0: i32) -> (i32, i32) {
    %c0_i32 = arith.constant 0 : i32
    %c0_i32_0 = arith.constant 0 : i32
    %c0_i32_1 = arith.constant 0 : i32
    return %c0_i32, %c0_i32_0 : i32, i32
  }
  func.func @transform_2(%arg0: i32) -> (i32, i32) {
    %c0_i32 = arith.constant 0 : i32
    %c0_i32_0 = arith.constant 0 : i32
    return %c0_i32, %arg0 : i32, i32
  }
  func.func @transform_3(%arg0: i32) -> (i32, i32) {
    %c0_i32 = arith.constant 0 : i32
    %c0_i32_0 = arith.constant 0 : i32
    return %c0_i32, %arg0 : i32, i32
  }
  func.func @transform_4(%arg0: i32) -> (i32, i32) {
    %c0_i32 = arith.constant 0 : i32
    %c0_i32_0 = arith.constant 0 : i32
    return %c0_i32, %arg0 : i32, i32
  }
}

</mosaic_0001>

<llo_original>
// kernel: sub.9
$region0: #{sub.9}
  #allocation0 [shape = 's32[1]{0}', space=sflag, size = 0x4, scoped, tag = 'scoped memory for sub.9']
  %s0 = inlined_call_operand.vmem [shape: f32[45], index: 0, kind: input, shape index: {}]
  %s1 = inlined_call_operand.vmem [shape: f32[45], index: 1, kind: input, shape index: {}]
  %s2 = inlined_call_operand.vmem [shape: f32[45], index: 2, kind: output, shape index: {}]
  %v3 = vld [vmem:[%s0] sm:$0x1]
  %v4 = vld [vmem:[%s1] sm:$0x1]
  %5 = xla_tuple %v3, %v4
  %6 = xla_tuple %5
  %v7 = vsub.f32 %v3, %v4
  %8 = xla_tuple %v7
  %9 = vst [vmem:[%s2] sm:$0x1] %v7

// kernel: mano_forward.1
$region0: #{mano_forward.1}
  #allocation0 [shape = 'u32[]', space=smem, size = 0x4, offset = 0x4, fixed_abs, tag = 'smem constant byte address 0x4 - core index']
  #allocation1 [shape = 'u32[144,128]{1,0:T(1,128)}', space=vmem, size = 0x12000, scoped, tag = 'internal scratch']
  %s0 = inlined_call_operand.vmem [shape: bf16[6,144], index: 0, kind: input, shape index: {}]
  %s1 = inlined_call_operand.vmem [shape: f32[24,16], index: 1, kind: input, shape index: {}]
  %s2 = inlined_call_operand.vmem [shape: bf16[144,2688], index: 2, kind: input, shape index: {}]
  %s3 = inlined_call_operand.vmem [shape: f32[16,896], index: 3, kind: input, shape index: {}]
  %s4 = inlined_call_operand.vmem [shape: f32[6,896], index: 4, kind: output, shape index: {}]
  %s5 = sld [smem:[#allocation0]]
  $region26: #{mano_forward.1} parent=0
    _
  %s7 = ssub.s32 1, %s5
  %s8 = scalar_select 0, %s7, %s5
  // Predicated region
  $region2: #{mano_forward.1} parent=0 // pred_check
    _
  $region3: #{mano_forward.1} parent=0 // pred_check_branch
    %10 = sbr.rel (0) target = $region5
  $region4: #{mano_forward.1} parent=0 // pred_region
    _
  $region5: #{mano_forward.1} parent=0 // pred_fallthru
    _
  // Predicated region
  $region6: #{mano_forward.1} parent=0 // pred_check
    _
  $region7: #{mano_forward.1} parent=0 // pred_check_branch
    %12 = sbr.rel (0) target = $region9
  $region8: #{mano_forward.1} parent=0 // pred_region
    _
  $region9: #{mano_forward.1} parent=0 // pred_fallthru
    _
  // Predicated region
  $region10: #{mano_forward.1} parent=0 // pred_check
    _
  $region11: #{mano_forward.1} parent=0 // pred_check_branch
    %14 = sbr.rel (0) target = $region13
  $region12: #{mano_forward.1} parent=0 // pred_region
    _
  $region13: #{mano_forward.1} parent=0 // pred_fallthru
    _
  // Predicated region
  $region14: #{mano_forward.1} parent=0 // pred_check
    _
  $region15: #{mano_forward.1} parent=0 // pred_check_branch
    %16 = sbr.rel (0) target = $region17
  $region16: #{mano_forward.1} parent=0 // pred_region
    _
  $region17: #{mano_forward.1} parent=0 // pred_fallthru
    _
  %v18 = vld [vmem:[%s0] sm:$0x77]
  %v19 = vld [vmem:[%s2] sm:$0xff]
  %v20 = vld [vmem:[%s2 + $0x8] sm:$0xff]
  %v21 = vld [vmem:[%s2 + $0x10] sm:$0xff]
  %v22 = vld [vmem:[%s2 + $0x18] sm:$0xff]
  %v23 = vld [vmem:[%s2 + $0x20] sm:$0xff]
  %v24 = vld [vmem:[%s2 + $0x28] sm:$0xff]
  %v25 = vld [vmem:[%s2 + $0x30] sm:$0xff]
  %v26 = vld [vmem:[%s2 + $0x38] sm:$0xff]
  %v27 = vld [vmem:[%s2 + $0x40] sm:$0xff]
  %v28 = vld [vmem:[%s2 + $0x48] sm:$0xff]
  %v29 = vld [vmem:[%s2 + $0x50] sm:$0xf]
  %v30 = vld [vmem:[%s2 + $0x54] sm:$0xff]
  %v31 = vld [vmem:[%s2 + $0x5c] sm:$0xff]
  %v32 = vld [vmem:[%s2 + $0x64] sm:$0xff]
  %v33 = vld [vmem:[%s2 + $0x6c] sm:$0xff]
  %v34 = vld [vmem:[%s2 + $0x74] sm:$0xff]
  %v35 = vld [vmem:[%s2 + $0x7c] sm:$0xff]
  %v36 = vld [vmem:[%s2 + $0x84] sm:$0xff]
  %v37 = vld [vmem:[%s2 + $0x8c] sm:$0xff]
  %v38 = vld [vmem:[%s2 + $0x94] sm:$0xff]
  %v39 = vld [vmem:[%s2 + $0x9c] sm:$0xff]
  %v40 = vld [vmem:[%s2 + $0xa4] sm:$0xf]
  %v41 = vld [vmem:[%s2 + $0xa8] sm:$0xff]
  %v42 = vld [vmem:[%s2 + $0xb0] sm:$0xff]
  %v43 = vld [vmem:[%s2 + $0xb8] sm:$0xff]
  %v44 = vld [vmem:[%s2 + $0xc0] sm:$0xff]
  %v45 = vld [vmem:[%s2 + $0xc8] sm:$0xff]
  %v46 = vld [vmem:[%s2 + $0xd0] sm:$0xff]
  %v47 = vld [vmem:[%s2 + $0xd8] sm:$0xff]
  %v48 = vld [vmem:[%s2 + $0xe0] sm:$0xff]
  %v49 = vld [vmem:[%s2 + $0xe8] sm:$0xff]
  %v50 = vld [vmem:[%s2 + $0xf0] sm:$0xff]
  %v51 = vld [vmem:[%s2 + $0xf8] sm:$0xf]
  %v52 = vld [vmem:[%s2 + $0xfc] sm:$0xff]
  %v53 = vld [vmem:[%s2 + $0x104] sm:$0xff]
  %v54 = vld [vmem:[%s2 + $0x10c] sm:$0xff]
  %v55 = vld [vmem:[%s2 + $0x114] sm:$0xff]
  %v56 = vld [vmem:[%s2 + $0x11c] sm:$0xff]
  %v57 = vld [vmem:[%s2 + $0x124] sm:$0xff]
  %v58 = vld [vmem:[%s2 + $0x12c] sm:$0xff]
  %v59 = vld [vmem:[%s2 + $0x134] sm:$0xff]
  %v60 = vld [vmem:[%s2 + $0x13c] sm:$0xff]
  %v61 = vld [vmem:[%s2 + $0x144] sm:$0xff]
  %v62 = vld [vmem:[%s2 + $0x14c] sm:$0xf]
  %v63 = vld [vmem:[%s2 + $0x150] sm:$0xff]
  %v64 = vld [vmem:[%s2 + $0x158] sm:$0xff]
  %v65 = vld [vmem:[%s2 + $0x160] sm:$0xff]
  %v66 = vld [vmem:[%s2 + $0x168] sm:$0xff]
  %v67 = vld [vmem:[%s2 + $0x170] sm:$0xff]
  %v68 = vld [vmem:[%s2 + $0x178] sm:$0xff]
  %v69 = vld [vmem:[%s2 + $0x180] sm:$0xff]
  %v70 = vld [vmem:[%s2 + $0x188] sm:$0xff]
  %v71 = vld [vmem:[%s2 + $0x190] sm:$0xff]
  %v72 = vld [vmem:[%s2 + $0x198] sm:$0xff]
  %v73 = vld [vmem:[%s2 + $0x1a0] sm:$0xf]
  %v74 = vld [vmem:[%s2 + $0x1a4] sm:$0xff]
  %v75 = vld [vmem:[%s2 + $0x1ac] sm:$0xff]
  %v76 = vld [vmem:[%s2 + $0x1b4] sm:$0xff]
  %v77 = vld [vmem:[%s2 + $0x1bc] sm:$0xff]
  %v78 = vld [vmem:[%s2 + $0x1c4] sm:$0xff]
  %v79 = vld [vmem:[%s2 + $0x1cc] sm:$0xff]
  %v80 = vld [vmem:[%s2 + $0x1d4] sm:$0xff]
  %v81 = vld [vmem:[%s2 + $0x1dc] sm:$0xff]
  %v82 = vld [vmem:[%s2 + $0x1e4] sm:$0xff]
  %v83 = vld [vmem:[%s2 + $0x1ec] sm:$0xff]
  %v84 = vld [vmem:[%s2 + $0x1f4] sm:$0xf]
  %v85 = vld [vmem:[%s2 + $0x1f8] sm:$0xff]
  %v86 = vld [vmem:[%s2 + $0x200] sm:$0xff]
  %v87 = vld [vmem:[%s2 + $0x208] sm:$0xff]
  %v88 = vld [vmem:[%s2 + $0x210] sm:$0xff]
  %v89 = vld [vmem:[%s2 + $0x218] sm:$0xff]
  %v90 = vld [vmem:[%s2 + $0x220] sm:$0xff]
  %v91 = vld [vmem:[%s2 + $0x228] sm:$0xff]
  %v92 = vld [vmem:[%s2 + $0x230] sm:$0xff]
  %v93 = vld [vmem:[%s2 + $0x238] sm:$0xff]
  %v94 = vld [vmem:[%s2 + $0x240] sm:$0xff]
  %v95 = vld [vmem:[%s2 + $0x248] sm:$0xf]
  %v96 = vld [vmem:[%s2 + $0x24c] sm:$0xff]
  %v97 = vld [vmem:[%s2 + $0x254] sm:$0xff]
  %v98 = vld [vmem:[%s2 + $0x25c] sm:$0xff]
  %v99 = vld [vmem:[%s2 + $0x264] sm:$0xff]
  %v100 = vld [vmem:[%s2 + $0x26c] sm:$0xff]
  %v101 = vld [vmem:[%s2 + $0x274] sm:$0xff]
  %v102 = vld [vmem:[%s2 + $0x27c] sm:$0xff]
  %v103 = vld [vmem:[%s2 + $0x284] sm:$0xff]
  %v104 = vld [vmem:[%s2 + $0x28c] sm:$0xff]
  %v105 = vld [vmem:[%s2 + $0x294] sm:$0xff]
  %v106 = vld [vmem:[%s2 + $0x29c] sm:$0xf]
  %v107 = vld [vmem:[%s2 + $0x2a0] sm:$0xff]
  %v108 = vld [vmem:[%s2 + $0x2a8] sm:$0xff]
  %v109 = vld [vmem:[%s2 + $0x2b0] sm:$0xff]
  %v110 = vld [vmem:[%s2 + $0x2b8] sm:$0xff]
  %v111 = vld [vmem:[%s2 + $0x2c0] sm:$0xff]
  %v112 = vld [vmem:[%s2 + $0x2c8] sm:$0xff]
  %v113 = vld [vmem:[%s2 + $0x2d0] sm:$0xff]
  %v114 = vld [vmem:[%s2 + $0x2d8] sm:$0xff]
  %v115 = vld [vmem:[%s2 + $0x2e0] sm:$0xff]
  %v116 = vld [vmem:[%s2 + $0x2e8] sm:$0xff]
  %v117 = vld [vmem:[%s2 + $0x2f0] sm:$0xf]
  %v118 = vld [vmem:[%s2 + $0x2f4] sm:$0xff]
  %v119 = vld [vmem:[%s2 + $0x2fc] sm:$0xff]
  %v120 = vld [vmem:[%s2 + $0x304] sm:$0xff]
  %v121 = vld [vmem:[%s2 + $0x30c] sm:$0xff]
  %v122 = vld [vmem:[%s2 + $0x314] sm:$0xff]
  %v123 = vld [vmem:[%s2 + $0x31c] sm:$0xff]
  %v124 = vld [vmem:[%s2 + $0x324] sm:$0xff]
  %v125 = vld [vmem:[%s2 + $0x32c] sm:$0xff]
  %v126 = vld [vmem:[%s2 + $0x334] sm:$0xff]
  %v127 = vld [vmem:[%s2 + $0x33c] sm:$0xff]
  %v128 = vld [vmem:[%s2 + $0x344] sm:$0xf]
  %v129 = vld [vmem:[%s2 + $0x348] sm:$0xff]
  %v130 = vld [vmem:[%s2 + $0x350] sm:$0xff]
  %v131 = vld [vmem:[%s2 + $0x358] sm:$0xff]
  %v132 = vld [vmem:[%s2 + $0x360] sm:$0xff]
  %v133 = vld [vmem:[%s2 + $0x368] sm:$0xff]
  %v134 = vld [vmem:[%s2 + $0x370] sm:$0xff]
  %v135 = vld [vmem:[%s2 + $0x378] sm:$0xff]
  %v136 = vld [vmem:[%s2 + $0x380] sm:$0xff]
  %v137 = vld [vmem:[%s2 + $0x388] sm:$0xff]
  %v138 = vld [vmem:[%s2 + $0x390] sm:$0xff]
  %v139 = vld [vmem:[%s2 + $0x398] sm:$0xf]
  %v140 = vld [vmem:[%s2 + $0x39c] sm:$0xff]
  %v141 = vld [vmem:[%s2 + $0x3a4] sm:$0xff]
  %v142 = vld [vmem:[%s2 + $0x3ac] sm:$0xff]
  %v143 = vld [vmem:[%s2 + $0x3b4] sm:$0xff]
  %v144 = vld [vmem:[%s2 + $0x3bc] sm:$0xff]
  %v145 = vld [vmem:[%s2 + $0x3c4] sm:$0xff]
  %v146 = vld [vmem:[%s2 + $0x3cc] sm:$0xff]
  %v147 = vld [vmem:[%s2 + $0x3d4] sm:$0xff]
  %v148 = vld [vmem:[%s2 + $0x3dc] sm:$0xff]
  %v149 = vld [vmem:[%s2 + $0x3e4] sm:$0xff]
  %v150 = vld [vmem:[%s2 + $0x3ec] sm:$0xf]
  %v151 = vld [vmem:[%s2 + $0x3f0] sm:$0xff]
  %v152 = vld [vmem:[%s2 + $0x3f8] sm:$0xff]
  %v153 = vld [vmem:[%s2 + $0x400] sm:$0xff]
  %v154 = vld [vmem:[%s2 + $0x408] sm:$0xff]
  %v155 = vld [vmem:[%s2 + $0x410] sm:$0xff]
  %v156 = vld [vmem:[%s2 + $0x418] sm:$0xff]
  %v157 = vld [vmem:[%s2 + $0x420] sm:$0xff]
  %v158 = vld [vmem:[%s2 + $0x428] sm:$0xff]
  %v159 = vld [vmem:[%s2 + $0x430] sm:$0xff]
  %v160 = vld [vmem:[%s2 + $0x438] sm:$0xff]
  %v161 = vld [vmem:[%s2 + $0x440] sm:$0xf]
  %v162 = vld [vmem:[%s2 + $0x444] sm:$0xff]
  %v163 = vld [vmem:[%s2 + $0x44c] sm:$0xff]
  %v164 = vld [vmem:[%s2 + $0x454] sm:$0xff]
  %v165 = vld [vmem:[%s2 + $0x45c] sm:$0xff]
  %v166 = vld [vmem:[%s2 + $0x464] sm:$0xff]
  %v167 = vld [vmem:[%s2 + $0x46c] sm:$0xff]
  %v168 = vld [vmem:[%s2 + $0x474] sm:$0xff]
  %v169 = vld [vmem:[%s2 + $0x47c] sm:$0xff]
  %v170 = vld [vmem:[%s2 + $0x484] sm:$0xff]
  %v171 = vld [vmem:[%s2 + $0x48c] sm:$0xff]
  %v172 = vld [vmem:[%s2 + $0x494] sm:$0xf]
  %v173 = vld [vmem:[%s2 + $0x498] sm:$0xff]
  %v174 = vld [vmem:[%s2 + $0x4a0] sm:$0xff]
  %v175 = vld [vmem:[%s2 + $0x4a8] sm:$0xff]
  %v176 = vld [vmem:[%s2 + $0x4b0] sm:$0xff]
  %v177 = vld [vmem:[%s2 + $0x4b8] sm:$0xff]
  %v178 = vld [vmem:[%s2 + $0x4c0] sm:$0xff]
  %v179 = vld [vmem:[%s2 + $0x4c8] sm:$0xff]
  %v180 = vld [vmem:[%s2 + $0x4d0] sm:$0xff]
  %v181 = vld [vmem:[%s2 + $0x4d8] sm:$0xff]
  %v182 = vld [vmem:[%s2 + $0x4e0] sm:$0xff]
  %v183 = vld [vmem:[%s2 + $0x4e8] sm:$0xf]
  %v184 = vld [vmem:[%s2 + $0x4ec] sm:$0xff]
  %v185 = vld [vmem:[%s2 + $0x4f4] sm:$0xff]
  %v186 = vld [vmem:[%s2 + $0x4fc] sm:$0xff]
  %v187 = vld [vmem:[%s2 + $0x504] sm:$0xff]
  %v188 = vld [vmem:[%s2 + $0x50c] sm:$0xff]
  %v189 = vld [vmem:[%s2 + $0x514] sm:$0xff]
  %v190 = vld [vmem:[%s2 + $0x51c] sm:$0xff]
  %v191 = vld [vmem:[%s2 + $0x524] sm:$0xff]
  %v192 = vld [vmem:[%s2 + $0x52c] sm:$0xff]
  %v193 = vld [vmem:[%s2 + $0x534] sm:$0xff]
  %v194 = vld [vmem:[%s2 + $0x53c] sm:$0xf]
  %v195 = vld [vmem:[%s2 + $0x540] sm:$0xff]
  %v196 = vld [vmem:[%s2 + $0x548] sm:$0xff]
  %v197 = vld [vmem:[%s2 + $0x550] sm:$0xff]
  %v198 = vld [vmem:[%s2 + $0x558] sm:$0xff]
  %v199 = vld [vmem:[%s2 + $0x560] sm:$0xff]
  %v200 = vld [vmem:[%s2 + $0x568] sm:$0xff]
  %v201 = vld [vmem:[%s2 + $0x570] sm:$0xff]
  %v202 = vld [vmem:[%s2 + $0x578] sm:$0xff]
  %v203 = vld [vmem:[%s2 + $0x580] sm:$0xff]
  %v204 = vld [vmem:[%s2 + $0x588] sm:$0xff]
  %v205 = vld [vmem:[%s2 + $0x590] sm:$0xf]
  %v206 = vld [vmem:[%s2 + $0x594] sm:$0xff]
  %v207 = vld [vmem:[%s2 + $0x59c] sm:$0xff]
  %v208 = vld [vmem:[%s2 + $0x5a4] sm:$0xff]
  %v209 = vld [vmem:[%s2 + $0x5ac] sm:$0xff]
  %v210 = vld [vmem:[%s2 + $0x5b4] sm:$0xff]
  %v211 = vld [vmem:[%s2 + $0x5bc] sm:$0xff]
  %v212 = vld [vmem:[%s2 + $0x5c4] sm:$0xff]
  %v213 = vld [vmem:[%s2 + $0x5cc] sm:$0xff]
  %v214 = vld [vmem:[%s2 + $0x5d4] sm:$0xff]
  %v215 = vld [vmem:[%s2 + $0x5dc] sm:$0xff]
  %v216 = vld [vmem:[%s2 + $0x5e4] sm:$0xf]
  %v218 = vunpack.c.l.b16 %v18
  %v219 = vunpack.c.h.b16 %v18
  %v220 = vpack.c.b16 %v218, %v218
  %v221 = vpack.c.b16 %v219, %v219
  %v421 = vunpack.c.l.b16 %v19
  %v422 = vunpack.c.h.b16 %v19
  %v423 = vunpack.c.l.b16 %v20
  %v424 = vunpack.c.h.b16 %v20
  %v425 = vunpack.c.l.b16 %v21
  %v426 = vunpack.c.h.b16 %v21
  %v427 = vunpack.c.l.b16 %v22
  %v428 = vunpack.c.h.b16 %v22
  %v429 = vunpack.c.l.b16 %v23
  %v430 = vunpack.c.h.b16 %v23
  %v431 = vunpack.c.l.b16 %v24
  %v432 = vunpack.c.h.b16 %v24
  %v433 = vunpack.c.l.b16 %v25
  %v434 = vunpack.c.h.b16 %v25
  %v435 = vunpack.c.l.b16 %v26
  %v436 = vunpack.c.h.b16 %v26
  %v437 = vunpack.c.l.b16 %v27
  %v438 = vunpack.c.h.b16 %v27
  %v439 = vunpack.c.l.b16 %v28
  %v440 = vunpack.c.h.b16 %v28
  %v441 = vunpack.c.l.b16 %v29
  %v442 = vunpack.c.l.b16 %v30
  %v443 = vunpack.c.h.b16 %v30
  %v444 = vunpack.c.l.b16 %v31
  %v445 = vunpack.c.h.b16 %v31
  %v446 = vunpack.c.l.b16 %v32
  %v447 = vunpack.c.h.b16 %v32
  %v448 = vunpack.c.l.b16 %v33
  %v449 = vunpack.c.h.b16 %v33
  %v450 = vunpack.c.l.b16 %v34
  %v451 = vunpack.c.h.b16 %v34
  %v452 = vunpack.c.l.b16 %v35
  %v453 = vunpack.c.h.b16 %v35
  %v454 = vunpack.c.l.b16 %v36
  %v455 = vunpack.c.h.b16 %v36
  %v456 = vunpack.c.l.b16 %v37
  %v457 = vunpack.c.h.b16 %v37
  %v458 = vunpack.c.l.b16 %v38
  %v459 = vunpack.c.h.b16 %v38
  %v460 = vunpack.c.l.b16 %v39
  %v461 = vunpack.c.h.b16 %v39
  %v462 = vunpack.c.l.b16 %v40
  %v463 = vunpack.c.l.b16 %v41
  %v464 = vunpack.c.h.b16 %v41
  %v465 = vunpack.c.l.b16 %v42
  %v466 = vunpack.c.h.b16 %v42
  %v467 = vunpack.c.l.b16 %v43
  %v468 = vunpack.c.h.b16 %v43
  %v469 = vunpack.c.l.b16 %v44
  %v470 = vunpack.c.h.b16 %v44
  %v471 = vunpack.c.l.b16 %v45
  %v472 = vunpack.c.h.b16 %v45
  %v473 = vunpack.c.l.b16 %v46
  %v474 = vunpack.c.h.b16 %v46
  %v475 = vunpack.c.l.b16 %v47
  %v476 = vunpack.c.h.b16 %v47
  %v477 = vunpack.c.l.b16 %v48
  %v478 = vunpack.c.h.b16 %v48
  %v479 = vunpack.c.l.b16 %v49
  %v480 = vunpack.c.h.b16 %v49
  %v481 = vunpack.c.l.b16 %v50
  %v482 = vunpack.c.h.b16 %v50
  %v483 = vunpack.c.l.b16 %v51
  %v484 = vunpack.c.l.b16 %v52
  %v485 = vunpack.c.h.b16 %v52
  %v486 = vunpack.c.l.b16 %v53
  %v487 = vunpack.c.h.b16 %v53
  %v488 = vunpack.c.l.b16 %v54
  %v489 = vunpack.c.h.b16 %v54
  %v490 = vunpack.c.l.b16 %v55
  %v491 = vunpack.c.h.b16 %v55
  %v492 = vunpack.c.l.b16 %v56
  %v493 = vunpack.c.h.b16 %v56
  %v494 = vunpack.c.l.b16 %v57
  %v495 = vunpack.c.h.b16 %v57
  %v496 = vunpack.c.l.b16 %v58
  %v497 = vunpack.c.h.b16 %v58
  %v498 = vunpack.c.l.b16 %v59
  %v499 = vunpack.c.h.b16 %v59
  %v500 = vunpack.c.l.b16 %v60
  %v501 = vunpack.c.h.b16 %v60
  %v502 = vunpack.c.l.b16 %v61
  %v503 = vunpack.c.h.b16 %v61
  %v504 = vunpack.c.l.b16 %v62
  %v505 = vunpack.c.l.b16 %v63
  %v506 = vunpack.c.h.b16 %v63
  %v507 = vunpack.c.l.b16 %v64
  %v508 = vunpack.c.h.b16 %v64
  %v509 = vunpack.c.l.b16 %v65
  %v510 = vunpack.c.h.b16 %v65
  %v511 = vunpack.c.l.b16 %v66
  %v512 = vunpack.c.h.b16 %v66
  %v513 = vunpack.c.l.b16 %v67
  %v514 = vunpack.c.h.b16 %v67
  %v515 = vunpack.c.l.b16 %v68
  %v516 = vunpack.c.h.b16 %v68
  %v517 = vunpack.c.l.b16 %v69
  %v518 = vunpack.c.h.b16 %v69
  %v519 = vunpack.c.l.b16 %v70
  %v520 = vunpack.c.h.b16 %v70
  %v521 = vunpack.c.l.b16 %v71
  %v522 = vunpack.c.h.b16 %v71
  %v523 = vunpack.c.l.b16 %v72
  %v524 = vunpack.c.h.b16 %v72
  %v525 = vunpack.c.l.b16 %v73
  %v526 = vunpack.c.l.b16 %v74
  %v527 = vunpack.c.h.b16 %v74
  %v528 = vunpack.c.l.b16 %v75
  %v529 = vunpack.c.h.b16 %v75
  %v530 = vunpack.c.l.b16 %v76
  %v531 = vunpack.c.h.b16 %v76
  %v532 = vunpack.c.l.b16 %v77
  %v533 = vunpack.c.h.b16 %v77
  %v534 = vunpack.c.l.b16 %v78
  %v535 = vunpack.c.h.b16 %v78
  %v536 = vunpack.c.l.b16 %v79
  %v537 = vunpack.c.h.b16 %v79
  %v538 = vunpack.c.l.b16 %v80
  %v539 = vunpack.c.h.b16 %v80
  %v540 = vunpack.c.l.b16 %v81
  %v541 = vunpack.c.h.b16 %v81
  %v542 = vunpack.c.l.b16 %v82
  %v543 = vunpack.c.h.b16 %v82
  %v544 = vunpack.c.l.b16 %v83
  %v545 = vunpack.c.h.b16 %v83
  %v546 = vunpack.c.l.b16 %v84
  %v547 = vunpack.c.l.b16 %v85
  %v548 = vunpack.c.h.b16 %v85
  %v549 = vunpack.c.l.b16 %v86
  %v550 = vunpack.c.h.b16 %v86
  %v551 = vunpack.c.l.b16 %v87
  %v552 = vunpack.c.h.b16 %v87
  %v553 = vunpack.c.l.b16 %v88
  %v554 = vunpack.c.h.b16 %v88
  %v555 = vunpack.c.l.b16 %v89
  %v556 = vunpack.c.h.b16 %v89
  %v557 = vunpack.c.l.b16 %v90
  %v558 = vunpack.c.h.b16 %v90
  %v559 = vunpack.c.l.b16 %v91
  %v560 = vunpack.c.h.b16 %v91
  %v561 = vunpack.c.l.b16 %v92
  %v562 = vunpack.c.h.b16 %v92
  %v563 = vunpack.c.l.b16 %v93
  %v564 = vunpack.c.h.b16 %v93
  %v565 = vunpack.c.l.b16 %v94
  %v566 = vunpack.c.h.b16 %v94
  %v567 = vunpack.c.l.b16 %v95
  %v568 = vunpack.c.l.b16 %v96
  %v569 = vunpack.c.h.b16 %v96
  %v570 = vunpack.c.l.b16 %v97
  %v571 = vunpack.c.h.b16 %v97
  %v572 = vunpack.c.l.b16 %v98
  %v573 = vunpack.c.h.b16 %v98
  %v574 = vunpack.c.l.b16 %v99
  %v575 = vunpack.c.h.b16 %v99
  %v576 = vunpack.c.l.b16 %v100
  %v577 = vunpack.c.h.b16 %v100
  %v578 = vunpack.c.l.b16 %v101
  %v579 = vunpack.c.h.b16 %v101
  %v580 = vunpack.c.l.b16 %v102
  %v581 = vunpack.c.h.b16 %v102
  %v582 = vunpack.c.l.b16 %v103
  %v583 = vunpack.c.h.b16 %v103
  %v584 = vunpack.c.l.b16 %v104
  %v585 = vunpack.c.h.b16 %v104
  %v586 = vunpack.c.l.b16 %v105
  %v587 = vunpack.c.h.b16 %v105
  %v588 = vunpack.c.l.b16 %v106
  %v589 = vunpack.c.l.b16 %v107
  %v590 = vunpack.c.h.b16 %v107
  %v591 = vunpack.c.l.b16 %v108
  %v592 = vunpack.c.h.b16 %v108
  %v593 = vunpack.c.l.b16 %v109
  %v594 = vunpack.c.h.b16 %v109
  %v595 = vunpack.c.l.b16 %v110
  %v596 = vunpack.c.h.b16 %v110
  %v597 = vunpack.c.l.b16 %v111
  %v598 = vunpack.c.h.b16 %v111
  %v599 = vunpack.c.l.b16 %v112
  %v600 = vunpack.c.h.b16 %v112
  %v601 = vunpack.c.l.b16 %v113
  %v602 = vunpack.c.h.b16 %v113
  %v603 = vunpack.c.l.b16 %v114
  %v604 = vunpack.c.h.b16 %v114
  %v605 = vunpack.c.l.b16 %v115
  %v606 = vunpack.c.h.b16 %v115
  %v607 = vunpack.c.l.b16 %v116
  %v608 = vunpack.c.h.b16 %v116
  %v609 = vunpack.c.l.b16 %v117
  %v610 = vunpack.c.l.b16 %v118
  %v611 = vunpack.c.h.b16 %v118
  %v612 = vunpack.c.l.b16 %v119
  %v613 = vunpack.c.h.b16 %v119
  %v614 = vunpack.c.l.b16 %v120
  %v615 = vunpack.c.h.b16 %v120
  %v616 = vunpack.c.l.b16 %v121
  %v617 = vunpack.c.h.b16 %v121
  %v618 = vunpack.c.l.b16 %v122
  %v619 = vunpack.c.h.b16 %v122
  %v620 = vunpack.c.l.b16 %v123
  %v621 = vunpack.c.h.b16 %v123
  %v622 = vunpack.c.l.b16 %v124
  %v623 = vunpack.c.h.b16 %v124
  %v624 = vunpack.c.l.b16 %v125
  %v625 = vunpack.c.h.b16 %v125
  %v626 = vunpack.c.l.b16 %v126
  %v627 = vunpack.c.h.b16 %v126
  %v628 = vunpack.c.l.b16 %v127
  %v629 = vunpack.c.h.b16 %v127
  %v630 = vunpack.c.l.b16 %v128
  %v631 = vunpack.c.l.b16 %v129
  %v632 = vunpack.c.h.b16 %v129
  %v633 = vunpack.c.l.b16 %v130
  %v634 = vunpack.c.h.b16 %v130
  %v635 = vunpack.c.l.b16 %v131
  %v636 = vunpack.c.h.b16 %v131
  %v637 = vunpack.c.l.b16 %v132
  %v638 = vunpack.c.h.b16 %v132
  %v639 = vunpack.c.l.b16 %v133
  %v640 = vunpack.c.h.b16 %v133
  %v641 = vunpack.c.l.b16 %v134
  %v642 = vunpack.c.h.b16 %v134
  %v643 = vunpack.c.l.b16 %v135
  %v644 = vunpack.c.h.b16 %v135
  %v645 = vunpack.c.l.b16 %v136
  %v646 = vunpack.c.h.b16 %v136
  %v647 = vunpack.c.l.b16 %v137
  %v648 = vunpack.c.h.b16 %v137
  %v649 = vunpack.c.l.b16 %v138
  %v650 = vunpack.c.h.b16 %v138
  %v651 = vunpack.c.l.b16 %v139
  %v652 = vunpack.c.l.b16 %v140
  %v653 = vunpack.c.h.b16 %v140
  %v654 = vunpack.c.l.b16 %v141
  %v655 = vunpack.c.h.b16 %v141
  %v656 = vunpack.c.l.b16 %v142
  %v657 = vunpack.c.h.b16 %v142
  %v658 = vunpack.c.l.b16 %v143
  %v659 = vunpack.c.h.b16 %v143
  %v660 = vunpack.c.l.b16 %v144
  %v661 = vunpack.c.h.b16 %v144
  %v662 = vunpack.c.l.b16 %v145
  %v663 = vunpack.c.h.b16 %v145
  %v664 = vunpack.c.l.b16 %v146
  %v665 = vunpack.c.h.b16 %v146
  %v666 = vunpack.c.l.b16 %v147
  %v667 = vunpack.c.h.b16 %v147
  %v668 = vunpack.c.l.b16 %v148
  %v669 = vunpack.c.h.b16 %v148
  %v670 = vunpack.c.l.b16 %v149
  %v671 = vunpack.c.h.b16 %v149
  %v672 = vunpack.c.l.b16 %v150
  %v673 = vunpack.c.l.b16 %v151
  %v674 = vunpack.c.h.b16 %v151
  %v675 = vunpack.c.l.b16 %v152
  %v676 = vunpack.c.h.b16 %v152
  %v677 = vunpack.c.l.b16 %v153
  %v678 = vunpack.c.h.b16 %v153
  %v679 = vunpack.c.l.b16 %v154
  %v680 = vunpack.c.h.b16 %v154
  %v681 = vunpack.c.l.b16 %v155
  %v682 = vunpack.c.h.b16 %v155
  %v683 = vunpack.c.l.b16 %v156
  %v684 = vunpack.c.h.b16 %v156
  %v685 = vunpack.c.l.b16 %v157
  %v686 = vunpack.c.h.b16 %v157
  %v687 = vunpack.c.l.b16 %v158
  %v688 = vunpack.c.h.b16 %v158
  %v689 = vunpack.c.l.b16 %v159
  %v690 = vunpack.c.h.b16 %v159
  %v691 = vunpack.c.l.b16 %v160
  %v692 = vunpack.c.h.b16 %v160
  %v693 = vunpack.c.l.b16 %v161
  %v694 = vunpack.c.l.b16 %v162
  %v695 = vunpack.c.h.b16 %v162
  %v696 = vunpack.c.l.b16 %v163
  %v697 = vunpack.c.h.b16 %v163
  %v698 = vunpack.c.l.b16 %v164
  %v699 = vunpack.c.h.b16 %v164
  %v700 = vunpack.c.l.b16 %v165
  %v701 = vunpack.c.h.b16 %v165
  %v702 = vunpack.c.l.b16 %v166
  %v703 = vunpack.c.h.b16 %v166
  %v704 = vunpack.c.l.b16 %v167
  %v705 = vunpack.c.h.b16 %v167
  %v706 = vunpack.c.l.b16 %v168
  %v707 = vunpack.c.h.b16 %v168
  %v708 = vunpack.c.l.b16 %v169
  %v709 = vunpack.c.h.b16 %v169
  %v710 = vunpack.c.l.b16 %v170
  %v711 = vunpack.c.h.b16 %v170
  %v712 = vunpack.c.l.b16 %v171
  %v713 = vunpack.c.h.b16 %v171
  %v714 = vunpack.c.l.b16 %v172
  %v715 = vunpack.c.l.b16 %v173
  %v716 = vunpack.c.h.b16 %v173
  %v717 = vunpack.c.l.b16 %v174
  %v718 = vunpack.c.h.b16 %v174
  %v719 = vunpack.c.l.b16 %v175
  %v720 = vunpack.c.h.b16 %v175
  %v721 = vunpack.c.l.b16 %v176
  %v722 = vunpack.c.h.b16 %v176
  %v723 = vunpack.c.l.b16 %v177
  %v724 = vunpack.c.h.b16 %v177
  %v725 = vunpack.c.l.b16 %v178
  %v726 = vunpack.c.h.b16 %v178
  %v727 = vunpack.c.l.b16 %v179
  %v728 = vunpack.c.h.b16 %v179
  %v729 = vunpack.c.l.b16 %v180
  %v730 = vunpack.c.h.b16 %v180
  %v731 = vunpack.c.l.b16 %v181
  %v732 = vunpack.c.h.b16 %v181
  %v733 = vunpack.c.l.b16 %v182
  %v734 = vunpack.c.h.b16 %v182
  %v735 = vunpack.c.l.b16 %v183
  %v736 = vunpack.c.l.b16 %v184
  %v737 = vunpack.c.h.b16 %v184
  %v738 = vunpack.c.l.b16 %v185
  %v739 = vunpack.c.h.b16 %v185
  %v740 = vunpack.c.l.b16 %v186
  %v741 = vunpack.c.h.b16 %v186
  %v742 = vunpack.c.l.b16 %v187
  %v743 = vunpack.c.h.b16 %v187
  %v744 = vunpack.c.l.b16 %v188
  %v745 = vunpack.c.h.b16 %v188
  %v746 = vunpack.c.l.b16 %v189
  %v747 = vunpack.c.h.b16 %v189
  %v748 = vunpack.c.l.b16 %v190
  %v749 = vunpack.c.h.b16 %v190
  %v750 = vunpack.c.l.b16 %v191
  %v751 = vunpack.c.h.b16 %v191
  %v752 = vunpack.c.l.b16 %v192
  %v753 = vunpack.c.h.b16 %v192
  %v754 = vunpack.c.l.b16 %v193
  %v755 = vunpack.c.h.b16 %v193
  %v756 = vunpack.c.l.b16 %v194
  %v757 = vunpack.c.l.b16 %v195
  %v758 = vunpack.c.h.b16 %v195
  %v759 = vunpack.c.l.b16 %v196
  %v760 = vunpack.c.h.b16 %v196
  %v761 = vunpack.c.l.b16 %v197
  %v762 = vunpack.c.h.b16 %v197
  %v763 = vunpack.c.l.b16 %v198
  %v764 = vunpack.c.h.b16 %v198
  %v765 = vunpack.c.l.b16 %v199
  %v766 = vunpack.c.h.b16 %v199
  %v767 = vunpack.c.l.b16 %v200
  %v768 = vunpack.c.h.b16 %v200
  %v769 = vunpack.c.l.b16 %v201
  %v770 = vunpack.c.h.b16 %v201
  %v771 = vunpack.c.l.b16 %v202
  %v772 = vunpack.c.h.b16 %v202
  %v773 = vunpack.c.l.b16 %v203
  %v774 = vunpack.c.h.b16 %v203
  %v775 = vunpack.c.l.b16 %v204
  %v776 = vunpack.c.h.b16 %v204
  %v777 = vunpack.c.l.b16 %v205
  %v778 = vunpack.c.l.b16 %v206
  %v779 = vunpack.c.h.b16 %v206
  %v780 = vunpack.c.l.b16 %v207
  %v781 = vunpack.c.h.b16 %v207
  %v782 = vunpack.c.l.b16 %v208
  %v783 = vunpack.c.h.b16 %v208
  %v784 = vunpack.c.l.b16 %v209
  %v785 = vunpack.c.h.b16 %v209
  %v786 = vunpack.c.l.b16 %v210
  %v787 = vunpack.c.h.b16 %v210
  %v788 = vunpack.c.l.b16 %v211
  %v789 = vunpack.c.h.b16 %v211
  %v790 = vunpack.c.l.b16 %v212
  %v791 = vunpack.c.h.b16 %v212
  %v792 = vunpack.c.l.b16 %v213
  %v793 = vunpack.c.h.b16 %v213
  %v794 = vunpack.c.l.b16 %v214
  %v795 = vunpack.c.h.b16 %v214
  %v796 = vunpack.c.l.b16 %v215
  %v797 = vunpack.c.h.b16 %v215
  %v798 = vunpack.c.l.b16 %v216
  %v799 = vpack.c.b16 %v442, %v421
  %v800 = vpack.c.b16 %v443, %v422
  %v801 = vpack.c.b16 %v444, %v423
  %v802 = vpack.c.b16 %v445, %v424
  %v803 = vpack.c.b16 %v446, %v425
  %v804 = vpack.c.b16 %v447, %v426
  %v805 = vpack.c.b16 %v448, %v427
  %v806 = vpack.c.b16 %v449, %v428
  %v807 = vpack.c.b16 %v450, %v429
  %v808 = vpack.c.b16 %v451, %v430
  %v809 = vpack.c.b16 %v452, %v431
  %v810 = vpack.c.b16 %v453, %v432
  %v811 = vpack.c.b16 %v454, %v433
  %v812 = vpack.c.b16 %v455, %v434
  %v813 = vpack.c.b16 %v456, %v435
  %v814 = vpack.c.b16 %v457, %v436
  %v815 = vpack.c.b16 %v458, %v437
  %v816 = vpack.c.b16 %v459, %v438
  %v817 = vpack.c.b16 %v460, %v439
  %v818 = vpack.c.b16 %v461, %v440
  %v819 = vpack.c.b16 %v462, %v441
  %v820 = vpack.c.b16 %v484, %v463
  %v821 = vpack.c.b16 %v485, %v464
  %v822 = vpack.c.b16 %v486, %v465
  %v823 = vpack.c.b16 %v487, %v466
  %v824 = vpack.c.b16 %v488, %v467
  %v825 = vpack.c.b16 %v489, %v468
  %v826 = vpack.c.b16 %v490, %v469
  %v827 = vpack.c.b16 %v491, %v470
  %v828 = vpack.c.b16 %v492, %v471
  %v829 = vpack.c.b16 %v493, %v472
  %v830 = vpack.c.b16 %v494, %v473
  %v831 = vpack.c.b16 %v495, %v474
  %v832 = vpack.c.b16 %v496, %v475
  %v833 = vpack.c.b16 %v497, %v476
  %v834 = vpack.c.b16 %v498, %v477
  %v835 = vpack.c.b16 %v499, %v478
  %v836 = vpack.c.b16 %v500, %v479
  %v837 = vpack.c.b16 %v501, %v480
  %v838 = vpack.c.b16 %v502, %v481
  %v839 = vpack.c.b16 %v503, %v482
  %v840 = vpack.c.b16 %v504, %v483
  %v841 = vpack.c.b16 %v526, %v505
  %v842 = vpack.c.b16 %v527, %v506
  %v843 = vpack.c.b16 %v528, %v507
  %v844 = vpack.c.b16 %v529, %v508
  %v845 = vpack.c.b16 %v530, %v509
  %v846 = vpack.c.b16 %v531, %v510
  %v847 = vpack.c.b16 %v532, %v511
  %v848 = vpack.c.b16 %v533, %v512
  %v849 = vpack.c.b16 %v534, %v513
  %v850 = vpack.c.b16 %v535, %v514
  %v851 = vpack.c.b16 %v536, %v515
  %v852 = vpack.c.b16 %v537, %v516
  %v853 = vpack.c.b16 %v538, %v517
  %v854 = vpack.c.b16 %v539, %v518
  %v855 = vpack.c.b16 %v540, %v519
  %v856 = vpack.c.b16 %v541, %v520
  %v857 = vpack.c.b16 %v542, %v521
  %v858 = vpack.c.b16 %v543, %v522
  %v859 = vpack.c.b16 %v544, %v523
  %v860 = vpack.c.b16 %v545, %v524
  %v861 = vpack.c.b16 %v546, %v525
  %v862 = vpack.c.b16 %v568, %v547
  %v863 = vpack.c.b16 %v569, %v548
  %v864 = vpack.c.b16 %v570, %v549
  %v865 = vpack.c.b16 %v571, %v550
  %v866 = vpack.c.b16 %v572, %v551
  %v867 = vpack.c.b16 %v573, %v552
  %v868 = vpack.c.b16 %v574, %v553
  %v869 = vpack.c.b16 %v575, %v554
  %v870 = vpack.c.b16 %v576, %v555
  %v871 = vpack.c.b16 %v577, %v556
  %v872 = vpack.c.b16 %v578, %v557
  %v873 = vpack.c.b16 %v579, %v558
  %v874 = vpack.c.b16 %v580, %v559
  %v875 = vpack.c.b16 %v581, %v560
  %v876 = vpack.c.b16 %v582, %v561
  %v877 = vpack.c.b16 %v583, %v562
  %v878 = vpack.c.b16 %v584, %v563
  %v879 = vpack.c.b16 %v585, %v564
  %v880 = vpack.c.b16 %v586, %v565
  %v881 = vpack.c.b16 %v587, %v566
  %v882 = vpack.c.b16 %v588, %v567
  %v883 = vpack.c.b16 %v610, %v589
  %v884 = vpack.c.b16 %v611, %v590
  %v885 = vpack.c.b16 %v612, %v591
  %v886 = vpack.c.b16 %v613, %v592
  %v887 = vpack.c.b16 %v614, %v593
  %v888 = vpack.c.b16 %v615, %v594
  %v889 = vpack.c.b16 %v616, %v595
  %v890 = vpack.c.b16 %v617, %v596
  %v891 = vpack.c.b16 %v618, %v597
  %v892 = vpack.c.b16 %v619, %v598
  %v893 = vpack.c.b16 %v620, %v599
  %v894 = vpack.c.b16 %v621, %v600
  %v895 = vpack.c.b16 %v622, %v601
  %v896 = vpack.c.b16 %v623, %v602
  %v897 = vpack.c.b16 %v624, %v603
  %v898 = vpack.c.b16 %v625, %v604
  %v899 = vpack.c.b16 %v626, %v605
  %v900 = vpack.c.b16 %v627, %v606
  %v901 = vpack.c.b16 %v628, %v607
  %v902 = vpack.c.b16 %v629, %v608
  %v903 = vpack.c.b16 %v630, %v609
  %v904 = vpack.c.b16 %v652, %v631
  %v905 = vpack.c.b16 %v653, %v632
  %v906 = vpack.c.b16 %v654, %v633
  %v907 = vpack.c.b16 %v655, %v634
  %v908 = vpack.c.b16 %v656, %v635
  %v909 = vpack.c.b16 %v657, %v636
  %v910 = vpack.c.b16 %v658, %v637
  %v911 = vpack.c.b16 %v659, %v638
  %v912 = vpack.c.b16 %v660, %v639
  %v913 = vpack.c.b16 %v661, %v640
  %v914 = vpack.c.b16 %v662, %v641
  %v915 = vpack.c.b16 %v663, %v642
  %v916 = vpack.c.b16 %v664, %v643
  %v917 = vpack.c.b16 %v665, %v644
  %v918 = vpack.c.b16 %v666, %v645
  %v919 = vpack.c.b16 %v667, %v646
  %v920 = vpack.c.b16 %v668, %v647
  %v921 = vpack.c.b16 %v669, %v648
  %v922 = vpack.c.b16 %v670, %v649
  %v923 = vpack.c.b16 %v671, %v650
  %v924 = vpack.c.b16 %v672, %v651
  %v925 = vpack.c.b16 %v694, %v673
  %v926 = vpack.c.b16 %v695, %v674
  %v927 = vpack.c.b16 %v696, %v675
  %v928 = vpack.c.b16 %v697, %v676
  %v929 = vpack.c.b16 %v698, %v677
  %v930 = vpack.c.b16 %v699, %v678
  %v931 = vpack.c.b16 %v700, %v679
  %v932 = vpack.c.b16 %v701, %v680
  %v933 = vpack.c.b16 %v702, %v681
  %v934 = vpack.c.b16 %v703, %v682
  %v935 = vpack.c.b16 %v704, %v683
  %v936 = vpack.c.b16 %v705, %v684
  %v937 = vpack.c.b16 %v706, %v685
  %v938 = vpack.c.b16 %v707, %v686
  %v939 = vpack.c.b16 %v708, %v687
  %v940 = vpack.c.b16 %v709, %v688
  %v941 = vpack.c.b16 %v710, %v689
  %v942 = vpack.c.b16 %v711, %v690
  %v943 = vpack.c.b16 %v712, %v691
  %v944 = vpack.c.b16 %v713, %v692
  %v945 = vpack.c.b16 %v714, %v693
  %v946 = vpack.c.b16 %v736, %v715
  %v947 = vpack.c.b16 %v737, %v716
  %v948 = vpack.c.b16 %v738, %v717
  %v949 = vpack.c.b16 %v739, %v718
  %v950 = vpack.c.b16 %v740, %v719
  %v951 = vpack.c.b16 %v741, %v720
  %v952 = vpack.c.b16 %v742, %v721
  %v953 = vpack.c.b16 %v743, %v722
  %v954 = vpack.c.b16 %v744, %v723
  %v955 = vpack.c.b16 %v745, %v724
  %v956 = vpack.c.b16 %v746, %v725
  %v957 = vpack.c.b16 %v747, %v726
  %v958 = vpack.c.b16 %v748, %v727
  %v959 = vpack.c.b16 %v749, %v728
  %v960 = vpack.c.b16 %v750, %v729
  %v961 = vpack.c.b16 %v751, %v730
  %v962 = vpack.c.b16 %v752, %v731
  %v963 = vpack.c.b16 %v753, %v732
  %v964 = vpack.c.b16 %v754, %v733
  %v965 = vpack.c.b16 %v755, %v734
  %v966 = vpack.c.b16 %v756, %v735
  %v967 = vpack.c.b16 %v778, %v757
  %v968 = vpack.c.b16 %v779, %v758
  %v969 = vpack.c.b16 %v780, %v759
  %v970 = vpack.c.b16 %v781, %v760
  %v971 = vpack.c.b16 %v782, %v761
  %v972 = vpack.c.b16 %v783, %v762
  %v973 = vpack.c.b16 %v784, %v763
  %v974 = vpack.c.b16 %v785, %v764
  %v975 = vpack.c.b16 %v786, %v765
  %v976 = vpack.c.b16 %v787, %v766
  %v977 = vpack.c.b16 %v788, %v767
  %v978 = vpack.c.b16 %v789, %v768
  %v979 = vpack.c.b16 %v790, %v769
  %v980 = vpack.c.b16 %v791, %v770
  %v981 = vpack.c.b16 %v792, %v771
  %v982 = vpack.c.b16 %v793, %v772
  %v983 = vpack.c.b16 %v794, %v773
  %v984 = vpack.c.b16 %v795, %v774
  %v985 = vpack.c.b16 %v796, %v775
  %v986 = vpack.c.b16 %v797, %v776
  %v987 = vpack.c.b16 %v798, %v777
  %vm1177 = vcmask 130048
  %v1179 = vsel %vm1177, %v221, 0
  %1181 = vmatprep.subr.bf16.mxu0 %v947
  %1182 = vmatpush1.bf16.msra.mxu0 %v946
  %1183 = vmatprep.subr.bf16.mxu0 %v926
  %1184 = vmatpush1.bf16.msra.mxu0 %v925
  %1185 = vmatprep.subr.bf16.mxu0 %v905
  %1186 = vmatpush1.bf16.msra.mxu0 %v904
  %1187 = vmatprep.subr.bf16.mxu0 %v884
  %1188 = vmatpush1.bf16.msra.mxu0 %v883
  %1189 = vmatprep.subr.bf16.mxu0 %v863
  %1190 = vmatpush1.bf16.msra.mxu0 %v862
  %1191 = vmatprep.subr.bf16.mxu0 %v842
  %1192 = vmatpush1.bf16.msra.mxu0 %v841
  %1193 = vmatprep.subr.bf16.mxu0 %v821
  %1194 = vmatpush1.bf16.msra.mxu0 %v820
  %1195 = vmatprep.subr.bf16.mxu0 %v800
  %1196 = vmatpush1.bf16.msra.mxu0 %v799
  %1197 = vmatprep.subr.bf16.mxu0 0
  %1198 = vmatpush2.bf16.msra.mxu0 0
  %1199 = vmatprep.subr.bf16.mxu0 0
  %1200 = vmatpush2.bf16.msra.mxu0 0
  %1201 = vmatprep.subr.bf16.mxu0 0
  %1202 = vmatpush2.bf16.msra.mxu0 0
  %1203 = vmatprep.subr.bf16.mxu0 0
  %1204 = vmatpush2.bf16.msra.mxu0 0
  %1205 = vmatprep.subr.bf16.mxu0 0
  %1206 = vmatpush2.bf16.msra.mxu0 0
  %1207 = vmatprep.subr.bf16.mxu0 0
  %1208 = vmatpush2.bf16.msra.mxu0 0
  %1209 = vmatprep.subr.bf16.mxu0 0
  %1210 = vmatpush2.bf16.msra.mxu0 0
  %1211 = vmatprep.subr.bf16.mxu0 %v968
  %1212 = vmatpush2.bf16.msra.mxu0 %v967
  %1213 = vmatprep.mubr.bf16.mxu0 %v1179
  %1214 = vmatmul.mubr.bf16.gmra.mxu0 %v220
  %v1215 = vpop.f32.mrf.mxu0
  %v1216 = vadd.f32 0.0, %v1215
  %v1217 = vpop.f32.mrf.mxu0
  %v1218 = vadd.f32 0.0, %v1217
  %v1219 = vpop.f32.mrf.mxu0
  %v1220 = vpop.f32.mrf.mxu0
  %1221 = vdwg.mxu0
  %1222 = vmatprep.subr.bf16.mxu0 %v949
  %1223 = vmatpush1.bf16.msra.mxu0 %v948
  %1224 = vmatprep.subr.bf16.mxu0 %v928
  %1225 = vmatpush1.bf16.msra.mxu0 %v927
  %1226 = vmatprep.subr.bf16.mxu0 %v907
  %1227 = vmatpush1.bf16.msra.mxu0 %v906
  %1228 = vmatprep.subr.bf16.mxu0 %v886
  %1229 = vmatpush1.bf16.msra.mxu0 %v885
  %1230 = vmatprep.subr.bf16.mxu0 %v865
  %1231 = vmatpush1.bf16.msra.mxu0 %v864
  %1232 = vmatprep.subr.bf16.mxu0 %v844
  %1233 = vmatpush1.bf16.msra.mxu0 %v843
  %1234 = vmatprep.subr.bf16.mxu0 %v823
  %1235 = vmatpush1.bf16.msra.mxu0 %v822
  %1236 = vmatprep.subr.bf16.mxu0 %v802
  %1237 = vmatpush1.bf16.msra.mxu0 %v801
  %1238 = vmatprep.subr.bf16.mxu0 0
  %1239 = vmatpush2.bf16.msra.mxu0 0
  %1240 = vmatprep.subr.bf16.mxu0 0
  %1241 = vmatpush2.bf16.msra.mxu0 0
  %1242 = vmatprep.subr.bf16.mxu0 0
  %1243 = vmatpush2.bf16.msra.mxu0 0
  %1244 = vmatprep.subr.bf16.mxu0 0
  %1245 = vmatpush2.bf16.msra.mxu0 0
  %1246 = vmatprep.subr.bf16.mxu0 0
  %1247 = vmatpush2.bf16.msra.mxu0 0
  %1248 = vmatprep.subr.bf16.mxu0 0
  %1249 = vmatpush2.bf16.msra.mxu0 0
  %1250 = vmatprep.subr.bf16.mxu0 0
  %1251 = vmatpush2.bf16.msra.mxu0 0
  %1252 = vmatprep.subr.bf16.mxu0 %v970
  %1253 = vmatpush2.bf16.msra.mxu0 %v969
  %1254 = vmatprep.mubr.bf16.mxu0 %v1179
  %1255 = vmatmul.mubr.bf16.gmra.mxu0 %v220
  %v1256 = vpop.f32.mrf.mxu0
  %v1257 = vadd.f32 0.0, %v1256
  %v1258 = vpop.f32.mrf.mxu0
  %v1259 = vadd.f32 0.0, %v1258
  %v1260 = vpop.f32.mrf.mxu0
  %v1261 = vpop.f32.mrf.mxu0
  %1262 = vdwg.mxu0
  %1263 = vmatprep.subr.bf16.mxu0 %v951
  %1264 = vmatpush1.bf16.msra.mxu0 %v950
  %1265 = vmatprep.subr.bf16.mxu0 %v930
  %1266 = vmatpush1.bf16.msra.mxu0 %v929
  %1267 = vmatprep.subr.bf16.mxu0 %v909
  %1268 = vmatpush1.bf16.msra.mxu0 %v908
  %1269 = vmatprep.subr.bf16.mxu0 %v888
  %1270 = vmatpush1.bf16.msra.mxu0 %v887
  %1271 = vmatprep.subr.bf16.mxu0 %v867
  %1272 = vmatpush1.bf16.msra.mxu0 %v866
  %1273 = vmatprep.subr.bf16.mxu0 %v846
  %1274 = vmatpush1.bf16.msra.mxu0 %v845
  %1275 = vmatprep.subr.bf16.mxu0 %v825
  %1276 = vmatpush1.bf16.msra.mxu0 %v824
  %1277 = vmatprep.subr.bf16.mxu0 %v804
  %1278 = vmatpush1.bf16.msra.mxu0 %v803
  %1279 = vmatprep.subr.bf16.mxu0 0
  %1280 = vmatpush2.bf16.msra.mxu0 0
  %1281 = vmatprep.subr.bf16.mxu0 0
  %1282 = vmatpush2.bf16.msra.mxu0 0
  %1283 = vmatprep.subr.bf16.mxu0 0
  %1284 = vmatpush2.bf16.msra.mxu0 0
  %1285 = vmatprep.subr.bf16.mxu0 0
  %1286 = vmatpush2.bf16.msra.mxu0 0
  %1287 = vmatprep.subr.bf16.mxu0 0
  %1288 = vmatpush2.bf16.msra.mxu0 0
  %1289 = vmatprep.subr.bf16.mxu0 0
  %1290 = vmatpush2.bf16.msra.mxu0 0
  %1291 = vmatprep.subr.bf16.mxu0 0
  %1292 = vmatpush2.bf16.msra.mxu0 0
  %1293 = vmatprep.subr.bf16.mxu0 %v972
  %1294 = vmatpush2.bf16.msra.mxu0 %v971
  %1295 = vmatprep.mubr.bf16.mxu0 %v1179
  %1296 = vmatmul.mubr.bf16.gmra.mxu0 %v220
  %v1297 = vpop.f32.mrf.mxu0
  %v1298 = vadd.f32 0.0, %v1297
  %v1299 = vpop.f32.mrf.mxu0
  %v1300 = vadd.f32 0.0, %v1299
  %v1301 = vpop.f32.mrf.mxu0
  %v1302 = vpop.f32.mrf.mxu0
  %1303 = vdwg.mxu0
  %1304 = vmatprep.subr.bf16.mxu0 %v953
  %1305 = vmatpush1.bf16.msra.mxu0 %v952
  %1306 = vmatprep.subr.bf16.mxu0 %v932
  %1307 = vmatpush1.bf16.msra.mxu0 %v931
  %1308 = vmatprep.subr.bf16.mxu0 %v911
  %1309 = vmatpush1.bf16.msra.mxu0 %v910
  %1310 = vmatprep.subr.bf16.mxu0 %v890
  %1311 = vmatpush1.bf16.msra.mxu0 %v889
  %1312 = vmatprep.subr.bf16.mxu0 %v869
  %1313 = vmatpush1.bf16.msra.mxu0 %v868
  %1314 = vmatprep.subr.bf16.mxu0 %v848
  %1315 = vmatpush1.bf16.msra.mxu0 %v847
  %1316 = vmatprep.subr.bf16.mxu0 %v827
  %1317 = vmatpush1.bf16.msra.mxu0 %v826
  %1318 = vmatprep.subr.bf16.mxu0 %v806
  %1319 = vmatpush1.bf16.msra.mxu0 %v805
  %1320 = vmatprep.subr.bf16.mxu0 0
  %1321 = vmatpush2.bf16.msra.mxu0 0
  %1322 = vmatprep.subr.bf16.mxu0 0
  %1323 = vmatpush2.bf16.msra.mxu0 0
  %1324 = vmatprep.subr.bf16.mxu0 0
  %1325 = vmatpush2.bf16.msra.mxu0 0
  %1326 = vmatprep.subr.bf16.mxu0 0
  %1327 = vmatpush2.bf16.msra.mxu0 0
  %1328 = vmatprep.subr.bf16.mxu0 0
  %1329 = vmatpush2.bf16.msra.mxu0 0
  %1330 = vmatprep.subr.bf16.mxu0 0
  %1331 = vmatpush2.bf16.msra.mxu0 0
  %1332 = vmatprep.subr.bf16.mxu0 0
  %1333 = vmatpush2.bf16.msra.mxu0 0
  %1334 = vmatprep.subr.bf16.mxu0 %v974
  %1335 = vmatpush2.bf16.msra.mxu0 %v973
  %1336 = vmatprep.mubr.bf16.mxu0 %v1179
  %1337 = vmatmul.mubr.bf16.gmra.mxu0 %v220
  %v1338 = vpop.f32.mrf.mxu0
  %v1339 = vadd.f32 0.0, %v1338
  %v1340 = vpop.f32.mrf.mxu0
  %v1341 = vadd.f32 0.0, %v1340
  %v1342 = vpop.f32.mrf.mxu0
  %v1343 = vpop.f32.mrf.mxu0
  %1344 = vdwg.mxu0
  %1345 = vmatprep.subr.bf16.mxu0 %v955
  %1346 = vmatpush1.bf16.msra.mxu0 %v954
  %1347 = vmatprep.subr.bf16.mxu0 %v934
  %1348 = vmatpush1.bf16.msra.mxu0 %v933
  %1349 = vmatprep.subr.bf16.mxu0 %v913
  %1350 = vmatpush1.bf16.msra.mxu0 %v912
  %1351 = vmatprep.subr.bf16.mxu0 %v892
  %1352 = vmatpush1.bf16.msra.mxu0 %v891
  %1353 = vmatprep.subr.bf16.mxu0 %v871
  %1354 = vmatpush1.bf16.msra.mxu0 %v870
  %1355 = vmatprep.subr.bf16.mxu0 %v850
  %1356 = vmatpush1.bf16.msra.mxu0 %v849
  %1357 = vmatprep.subr.bf16.mxu0 %v829
  %1358 = vmatpush1.bf16.msra.mxu0 %v828
  %1359 = vmatprep.subr.bf16.mxu0 %v808
  %1360 = vmatpush1.bf16.msra.mxu0 %v807
  %1361 = vmatprep.subr.bf16.mxu0 0
  %1362 = vmatpush2.bf16.msra.mxu0 0
  %1363 = vmatprep.subr.bf16.mxu0 0
  %1364 = vmatpush2.bf16.msra.mxu0 0
  %1365 = vmatprep.subr.bf16.mxu0 0
  %1366 = vmatpush2.bf16.msra.mxu0 0
  %1367 = vmatprep.subr.bf16.mxu0 0
  %1368 = vmatpush2.bf16.msra.mxu0 0
  %1369 = vmatprep.subr.bf16.mxu0 0
  %1370 = vmatpush2.bf16.msra.mxu0 0
  %1371 = vmatprep.subr.bf16.mxu0 0
  %1372 = vmatpush2.bf16.msra.mxu0 0
  %1373 = vmatprep.subr.bf16.mxu0 0
  %1374 = vmatpush2.bf16.msra.mxu0 0
  %1375 = vmatprep.subr.bf16.mxu0 %v976
  %1376 = vmatpush2.bf16.msra.mxu0 %v975
  %1377 = vmatprep.mubr.bf16.mxu0 %v1179
  %1378 = vmatmul.mubr.bf16.gmra.mxu0 %v220
  %v1379 = vpop.f32.mrf.mxu0
  %v1380 = vadd.f32 0.0, %v1379
  %v1381 = vpop.f32.mrf.mxu0
  %v1382 = vadd.f32 0.0, %v1381
  %v1383 = vpop.f32.mrf.mxu0
  %v1384 = vpop.f32.mrf.mxu0
  %1385 = vdwg.mxu0
  %1386 = vmatprep.subr.bf16.mxu0 %v957
  %1387 = vmatpush1.bf16.msra.mxu0 %v956
  %1388 = vmatprep.subr.bf16.mxu0 %v936
  %1389 = vmatpush1.bf16.msra.mxu0 %v935
  %1390 = vmatprep.subr.bf16.mxu0 %v915
  %1391 = vmatpush1.bf16.msra.mxu0 %v914
  %1392 = vmatprep.subr.bf16.mxu0 %v894
  %1393 = vmatpush1.bf16.msra.mxu0 %v893
  %1394 = vmatprep.subr.bf16.mxu0 %v873
  %1395 = vmatpush1.bf16.msra.mxu0 %v872
  %1396 = vmatprep.subr.bf16.mxu0 %v852
  %1397 = vmatpush1.bf16.msra.mxu0 %v851
  %1398 = vmatprep.subr.bf16.mxu0 %v831
  %1399 = vmatpush1.bf16.msra.mxu0 %v830
  %1400 = vmatprep.subr.bf16.mxu0 %v810
  %1401 = vmatpush1.bf16.msra.mxu0 %v809
  %1402 = vmatprep.subr.bf16.mxu0 0
  %1403 = vmatpush2.bf16.msra.mxu0 0
  %1404 = vmatprep.subr.bf16.mxu0 0
  %1405 = vmatpush2.bf16.msra.mxu0 0
  %1406 = vmatprep.subr.bf16.mxu0 0
  %1407 = vmatpush2.bf16.msra.mxu0 0
  %1408 = vmatprep.subr.bf16.mxu0 0
  %1409 = vmatpush2.bf16.msra.mxu0 0
  %1410 = vmatprep.subr.bf16.mxu0 0
  %1411 = vmatpush2.bf16.msra.mxu0 0
  %1412 = vmatprep.subr.bf16.mxu0 0
  %1413 = vmatpush2.bf16.msra.mxu0 0
  %1414 = vmatprep.subr.bf16.mxu0 0
  %1415 = vmatpush2.bf16.msra.mxu0 0
  %1416 = vmatprep.subr.bf16.mxu0 %v978
  %1417 = vmatpush2.bf16.msra.mxu0 %v977
  %1418 = vmatprep.mubr.bf16.mxu0 %v1179
  %1419 = vmatmul.mubr.bf16.gmra.mxu0 %v220
  %v1420 = vpop.f32.mrf.mxu0
  %v1421 = vadd.f32 0.0, %v1420
  %v1422 = vpop.f32.mrf.mxu0
  %v1423 = vadd.f32 0.0, %v1422
  %v1424 = vpop.f32.mrf.mxu0
  %v1425 = vpop.f32.mrf.mxu0
  %1426 = vdwg.mxu0
  %1427 = vmatprep.subr.bf16.mxu0 %v959
  %1428 = vmatpush1.bf16.msra.mxu0 %v958
  %1429 = vmatprep.subr.bf16.mxu0 %v938
  %1430 = vmatpush1.bf16.msra.mxu0 %v937
  %1431 = vmatprep.subr.bf16.mxu0 %v917
  %1432 = vmatpush1.bf16.msra.mxu0 %v916
  %1433 = vmatprep.subr.bf16.mxu0 %v896
  %1434 = vmatpush1.bf16.msra.mxu0 %v895
  %1435 = vmatprep.subr.bf16.mxu0 %v875
  %1436 = vmatpush1.bf16.msra.mxu0 %v874
  %1437 = vmatprep.subr.bf16.mxu0 %v854
  %1438 = vmatpush1.bf16.msra.mxu0 %v853
  %1439 = vmatprep.subr.bf16.mxu0 %v833
  %1440 = vmatpush1.bf16.msra.mxu0 %v832
  %1441 = vmatprep.subr.bf16.mxu0 %v812
  %1442 = vmatpush1.bf16.msra.mxu0 %v811
  %1443 = vmatprep.subr.bf16.mxu0 0
  %1444 = vmatpush2.bf16.msra.mxu0 0
  %1445 = vmatprep.subr.bf16.mxu0 0
  %1446 = vmatpush2.bf16.msra.mxu0 0
  %1447 = vmatprep.subr.bf16.mxu0 0
  %1448 = vmatpush2.bf16.msra.mxu0 0
  %1449 = vmatprep.subr.bf16.mxu0 0
  %1450 = vmatpush2.bf16.msra.mxu0 0
  %1451 = vmatprep.subr.bf16.mxu0 0
  %1452 = vmatpush2.bf16.msra.mxu0 0
  %1453 = vmatprep.subr.bf16.mxu0 0
  %1454 = vmatpush2.bf16.msra.mxu0 0
  %1455 = vmatprep.subr.bf16.mxu0 0
  %1456 = vmatpush2.bf16.msra.mxu0 0
  %1457 = vmatprep.subr.bf16.mxu0 %v980
  %1458 = vmatpush2.bf16.msra.mxu0 %v979
  %1459 = vmatprep.mubr.bf16.mxu0 %v1179
  %1460 = vmatmul.mubr.bf16.gmra.mxu0 %v220
  %v1461 = vpop.f32.mrf.mxu0
  %v1462 = vadd.f32 0.0, %v1461
  %v1463 = vpop.f32.mrf.mxu0
  %v1464 = vadd.f32 0.0, %v1463
  %v1465 = vpop.f32.mrf.mxu0
  %v1466 = vpop.f32.mrf.mxu0
  %1467 = vdwg.mxu0
  %1468 = vmatprep.subr.bf16.mxu0 %v961
  %1469 = vmatpush1.bf16.msra.mxu0 %v960
  %1470 = vmatprep.subr.bf16.mxu0 %v940
  %1471 = vmatpush1.bf16.msra.mxu0 %v939
  %1472 = vmatprep.subr.bf16.mxu0 %v919
  %1473 = vmatpush1.bf16.msra.mxu0 %v918
  %1474 = vmatprep.subr.bf16.mxu0 %v898
  %1475 = vmatpush1.bf16.msra.mxu0 %v897
  %1476 = vmatprep.subr.bf16.mxu0 %v877
  %1477 = vmatpush1.bf16.msra.mxu0 %v876
  %1478 = vmatprep.subr.bf16.mxu0 %v856
  %1479 = vmatpush1.bf16.msra.mxu0 %v855
  %1480 = vmatprep.subr.bf16.mxu0 %v835
  %1481 = vmatpush1.bf16.msra.mxu0 %v834
  %1482 = vmatprep.subr.bf16.mxu0 %v814
  %1483 = vmatpush1.bf16.msra.mxu0 %v813
  %1484 = vmatprep.subr.bf16.mxu0 0
  %1485 = vmatpush2.bf16.msra.mxu0 0
  %1486 = vmatprep.subr.bf16.mxu0 0
  %1487 = vmatpush2.bf16.msra.mxu0 0
  %1488 = vmatprep.subr.bf16.mxu0 0
  %1489 = vmatpush2.bf16.msra.mxu0 0
  %1490 = vmatprep.subr.bf16.mxu0 0
  %1491 = vmatpush2.bf16.msra.mxu0 0
  %1492 = vmatprep.subr.bf16.mxu0 0
  %1493 = vmatpush2.bf16.msra.mxu0 0
  %1494 = vmatprep.subr.bf16.mxu0 0
  %1495 = vmatpush2.bf16.msra.mxu0 0
  %1496 = vmatprep.subr.bf16.mxu0 0
  %1497 = vmatpush2.bf16.msra.mxu0 0
  %1498 = vmatprep.subr.bf16.mxu0 %v982
  %1499 = vmatpush2.bf16.msra.mxu0 %v981
  %1500 = vmatprep.mubr.bf16.mxu0 %v1179
  %1501 = vmatmul.mubr.bf16.gmra.mxu0 %v220
  %v1502 = vpop.f32.mrf.mxu0
  %v1503 = vadd.f32 0.0, %v1502
  %v1504 = vpop.f32.mrf.mxu0
  %v1505 = vadd.f32 0.0, %v1504
  %v1506 = vpop.f32.mrf.mxu0
  %v1507 = vpop.f32.mrf.mxu0
  %1508 = vdwg.mxu0
  %1509 = vmatprep.subr.bf16.mxu0 %v963
  %1510 = vmatpush1.bf16.msra.mxu0 %v962
  %1511 = vmatprep.subr.bf16.mxu0 %v942
  %1512 = vmatpush1.bf16.msra.mxu0 %v941
  %1513 = vmatprep.subr.bf16.mxu0 %v921
  %1514 = vmatpush1.bf16.msra.mxu0 %v920
  %1515 = vmatprep.subr.bf16.mxu0 %v900
  %1516 = vmatpush1.bf16.msra.mxu0 %v899
  %1517 = vmatprep.subr.bf16.mxu0 %v879
  %1518 = vmatpush1.bf16.msra.mxu0 %v878
  %1519 = vmatprep.subr.bf16.mxu0 %v858
  %1520 = vmatpush1.bf16.msra.mxu0 %v857
  %1521 = vmatprep.subr.bf16.mxu0 %v837
  %1522 = vmatpush1.bf16.msra.mxu0 %v836
  %1523 = vmatprep.subr.bf16.mxu0 %v816
  %1524 = vmatpush1.bf16.msra.mxu0 %v815
  %1525 = vmatprep.subr.bf16.mxu0 0
  %1526 = vmatpush2.bf16.msra.mxu0 0
  %1527 = vmatprep.subr.bf16.mxu0 0
  %1528 = vmatpush2.bf16.msra.mxu0 0
  %1529 = vmatprep.subr.bf16.mxu0 0
  %1530 = vmatpush2.bf16.msra.mxu0 0
  %1531 = vmatprep.subr.bf16.mxu0 0
  %1532 = vmatpush2.bf16.msra.mxu0 0
  %1533 = vmatprep.subr.bf16.mxu0 0
  %1534 = vmatpush2.bf16.msra.mxu0 0
  %1535 = vmatprep.subr.bf16.mxu0 0
  %1536 = vmatpush2.bf16.msra.mxu0 0
  %1537 = vmatprep.subr.bf16.mxu0 0
  %1538 = vmatpush2.bf16.msra.mxu0 0
  %1539 = vmatprep.subr.bf16.mxu0 %v984
  %1540 = vmatpush2.bf16.msra.mxu0 %v983
  %1541 = vmatprep.mubr.bf16.mxu0 %v1179
  %1542 = vmatmul.mubr.bf16.gmra.mxu0 %v220
  %v1543 = vpop.f32.mrf.mxu0
  %v1544 = vadd.f32 0.0, %v1543
  %v1545 = vpop.f32.mrf.mxu0
  %v1546 = vadd.f32 0.0, %v1545
  %v1547 = vpop.f32.mrf.mxu0
  %v1548 = vpop.f32.mrf.mxu0
  %1549 = vdwg.mxu0
  %1550 = vmatprep.subr.bf16.mxu0 %v965
  %1551 = vmatpush1.bf16.msra.mxu0 %v964
  %1552 = vmatprep.subr.bf16.mxu0 %v944
  %1553 = vmatpush1.bf16.msra.mxu0 %v943
  %1554 = vmatprep.subr.bf16.mxu0 %v923
  %1555 = vmatpush1.bf16.msra.mxu0 %v922
  %1556 = vmatprep.subr.bf16.mxu0 %v902
  %1557 = vmatpush1.bf16.msra.mxu0 %v901
  %1558 = vmatprep.subr.bf16.mxu0 %v881
  %1559 = vmatpush1.bf16.msra.mxu0 %v880
  %1560 = vmatprep.subr.bf16.mxu0 %v860
  %1561 = vmatpush1.bf16.msra.mxu0 %v859
  %1562 = vmatprep.subr.bf16.mxu0 %v839
  %1563 = vmatpush1.bf16.msra.mxu0 %v838
  %1564 = vmatprep.subr.bf16.mxu0 %v818
  %1565 = vmatpush1.bf16.msra.mxu0 %v817
  %1566 = vmatprep.subr.bf16.mxu0 0
  %1567 = vmatpush2.bf16.msra.mxu0 0
  %1568 = vmatprep.subr.bf16.mxu0 0
  %1569 = vmatpush2.bf16.msra.mxu0 0
  %1570 = vmatprep.subr.bf16.mxu0 0
  %1571 = vmatpush2.bf16.msra.mxu0 0
  %1572 = vmatprep.subr.bf16.mxu0 0
  %1573 = vmatpush2.bf16.msra.mxu0 0
  %1574 = vmatprep.subr.bf16.mxu0 0
  %1575 = vmatpush2.bf16.msra.mxu0 0
  %1576 = vmatprep.subr.bf16.mxu0 0
  %1577 = vmatpush2.bf16.msra.mxu0 0
  %1578 = vmatprep.subr.bf16.mxu0 0
  %1579 = vmatpush2.bf16.msra.mxu0 0
  %1580 = vmatprep.subr.bf16.mxu0 %v986
  %1581 = vmatpush2.bf16.msra.mxu0 %v985
  %1582 = vmatprep.mubr.bf16.mxu0 %v1179
  %1583 = vmatmul.mubr.bf16.gmra.mxu0 %v220
  %v1584 = vpop.f32.mrf.mxu0
  %v1585 = vadd.f32 0.0, %v1584
  %v1586 = vpop.f32.mrf.mxu0
  %v1587 = vadd.f32 0.0, %v1586
  %v1588 = vpop.f32.mrf.mxu0
  %v1589 = vpop.f32.mrf.mxu0
  %1590 = vdwg.mxu0
  %1591 = vmatprep.subr.bf16.mxu0 0
  %1592 = vmatpush1.bf16.msra.mxu0 %v966
  %1593 = vmatprep.subr.bf16.mxu0 0
  %1594 = vmatpush1.bf16.msra.mxu0 %v945
  %1595 = vmatprep.subr.bf16.mxu0 0
  %1596 = vmatpush1.bf16.msra.mxu0 %v924
  %1597 = vmatprep.subr.bf16.mxu0 0
  %1598 = vmatpush1.bf16.msra.mxu0 %v903
  %1599 = vmatprep.subr.bf16.mxu0 0
  %1600 = vmatpush1.bf16.msra.mxu0 %v882
  %1601 = vmatprep.subr.bf16.mxu0 0
  %1602 = vmatpush1.bf16.msra.mxu0 %v861
  %1603 = vmatprep.subr.bf16.mxu0 0
  %1604 = vmatpush1.bf16.msra.mxu0 %v840
  %1605 = vmatprep.subr.bf16.mxu0 0
  %1606 = vmatpush1.bf16.msra.mxu0 %v819
  %1607 = vmatprep.subr.bf16.mxu0 0
  %1608 = vmatpush2.bf16.msra.mxu0 0
  %1609 = vmatprep.subr.bf16.mxu0 0
  %1610 = vmatpush2.bf16.msra.mxu0 0
  %1611 = vmatprep.subr.bf16.mxu0 0
  %1612 = vmatpush2.bf16.msra.mxu0 0
  %1613 = vmatprep.subr.bf16.mxu0 0
  %1614 = vmatpush2.bf16.msra.mxu0 0
  %1615 = vmatprep.subr.bf16.mxu0 0
  %1616 = vmatpush2.bf16.msra.mxu0 0
  %1617 = vmatprep.subr.bf16.mxu0 0
  %1618 = vmatpush2.bf16.msra.mxu0 0
  %1619 = vmatprep.subr.bf16.mxu0 0
  %1620 = vmatpush2.bf16.msra.mxu0 0
  %1621 = vmatprep.subr.bf16.mxu0 0
  %1622 = vmatpush2.bf16.msra.mxu0 %v987
  %1623 = vmatprep.mubr.bf16.mxu0 %v1179
  %1624 = vmatmul.mubr.bf16.gmra.mxu0 %v220
  %v1625 = vpop.f32.mrf.mxu0
  %v1626 = vadd.f32 0.0, %v1625
  %v1627 = vpop.f32.mrf.mxu0
  %v1628 = vpop.f32.mrf.mxu0
  %v1629 = vpop.f32.mrf.mxu0
  %1630 = vdwg.mxu0
  %v1631 = vld [vmem:[%s1] sm:$0xff]
  %v1632 = vld [vmem:[%s1 + $0x8] sm:$0xff]
  %v1633 = vld [vmem:[%s1 + $0x10] sm:$0xff]
  %v1634 = vld [vmem:[%s3] sm:$0xff]
  %v1635 = vld [vmem:[%s3 + $0x8] sm:$0xff]
  %v1636 = vld [vmem:[%s3 + $0x10] sm:$0xff]
  %v1637 = vld [vmem:[%s3 + $0x18] sm:$0xff]
  %v1638 = vld [vmem:[%s3 + $0x20] sm:$0xff]
  %v1639 = vld [vmem:[%s3 + $0x28] sm:$0xff]
  %v1640 = vld [vmem:[%s3 + $0x30] sm:$0xff]
  %v1641 = vld [vmem:[%s3 + $0x38] sm:$0xff]
  %v1642 = vld [vmem:[%s3 + $0x40] sm:$0xff]
  %v1643 = vld [vmem:[%s3 + $0x48] sm:$0xff]
  %v1644 = vld [vmem:[%s3 + $0x50] sm:$0xff]
  %v1645 = vld [vmem:[%s3 + $0x58] sm:$0xff]
  %v1646 = vld [vmem:[%s3 + $0x60] sm:$0xff]
  %v1647 = vld [vmem:[%s3 + $0x68] sm:$0xff]
  %v1649 = vsel %vm1177, %v1631, 0
  %v1652 = vsel %vm1177, %v1632, 0
  %v1655 = vsel %vm1177, %v1633, 0
  %1657 = vmatprep.subr.mxu0 0.0
  %1658 = vmatpush1.msra.mxu0 0.0
  %1659 = vmatprep.subr.mxu0 0.0
  %1660 = vmatpush1.msra.mxu0 0.0
  %1661 = vmatprep.subr.mxu0 0.0
  %1662 = vmatpush1.msra.mxu0 0.0
  %1663 = vmatprep.subr.mxu0 0.0
  %1664 = vmatpush1.msra.mxu0 0.0
  %1665 = vmatprep.subr.mxu0 0.0
  %1666 = vmatpush1.msra.mxu0 0.0
  %1667 = vmatprep.subr.mxu0 0.0
  %1668 = vmatpush1.msra.mxu0 0.0
  %1669 = vmatprep.subr.mxu0 0.0
  %1670 = vmatpush1.msra.mxu0 0.0
  %1671 = vmatprep.subr.mxu0 0.0
  %1672 = vmatpush1.msra.mxu0 0.0
  %1673 = vmatprep.subr.mxu0 0.0
  %1674 = vmatpush1.msra.mxu0 0.0
  %1675 = vmatprep.subr.mxu0 0.0
  %1676 = vmatpush1.msra.mxu0 0.0
  %1677 = vmatprep.subr.mxu0 0.0
  %1678 = vmatpush1.msra.mxu0 0.0
  %1679 = vmatprep.subr.mxu0 0.0
  %1680 = vmatpush1.msra.mxu0 0.0
  %1681 = vmatprep.subr.mxu0 0.0
  %1682 = vmatpush1.msra.mxu0 0.0
  %1683 = vmatprep.subr.mxu0 0.0
  %1684 = vmatpush1.msra.mxu0 0.0
  %1685 = vmatprep.subr.mxu0 %v1642
  %1686 = vmatpush1.msra.mxu0 %v1641
  %1687 = vmatprep.subr.mxu0 %v1635
  %1688 = vmatpush1.msra.mxu0 %v1634
  %1689 = vmatprep.subr.mxu0 0.0
  %1690 = vmatpush2.msra.mxu0 0.0
  %1691 = vmatprep.subr.mxu0 0.0
  %1692 = vmatpush2.msra.mxu0 0.0
  %1693 = vmatprep.subr.mxu0 0.0
  %1694 = vmatpush2.msra.mxu0 0.0
  %1695 = vmatprep.subr.mxu0 0.0
  %1696 = vmatpush2.msra.mxu0 0.0
  %1697 = vmatprep.subr.mxu0 0.0
  %1698 = vmatpush2.msra.mxu0 0.0
  %1699 = vmatprep.subr.mxu0 0.0
  %1700 = vmatpush2.msra.mxu0 0.0
  %1701 = vmatprep.subr.mxu0 0.0
  %1702 = vmatpush2.msra.mxu0 0.0
  %1703 = vmatprep.subr.mxu0 0.0
  %1704 = vmatpush2.msra.mxu0 0.0
  %1705 = vmatprep.subr.mxu0 0.0
  %1706 = vmatpush2.msra.mxu0 0.0
  %1707 = vmatprep.subr.mxu0 0.0
  %1708 = vmatpush2.msra.mxu0 0.0
  %1709 = vmatprep.subr.mxu0 0.0
  %1710 = vmatpush2.msra.mxu0 0.0
  %1711 = vmatprep.subr.mxu0 0.0
  %1712 = vmatpush2.msra.mxu0 0.0
  %1713 = vmatprep.subr.mxu0 0.0
  %1714 = vmatpush2.msra.mxu0 0.0
  %1715 = vmatprep.subr.mxu0 0.0
  %1716 = vmatpush2.msra.mxu0 0.0
  %1717 = vmatprep.subr.mxu0 0.0
  %1718 = vmatpush2.msra.mxu0 0.0
  %1719 = vmatprep.subr.mxu0 0.0
  %1720 = vmatpush2.msra.mxu0 0.0
  %1721 = vmatprep.mubr.f32.mxu0 0.0
  %1722 = vmatmul.mubr.f32.gmra.mxu0 %v1649
  %v1723 = vpop.f32.mrf.mxu0
  %v1724 = vadd.f32 0.0, %v1723
  %v1725 = vpop.f32.mrf.mxu0
  %v1726 = vadd.f32 0.0, %v1725
  %1727 = vmatprep.mubr.f32.mxu0 0.0
  %1728 = vmatmul.mubr.f32.gmra.mxu0 %v1652
  %v1729 = vpop.f32.mrf.mxu0
  %v1730 = vadd.f32 0.0, %v1729
  %v1731 = vpop.f32.mrf.mxu0
  %v1732 = vadd.f32 0.0, %v1731
  %1733 = vmatprep.mubr.f32.mxu0 0.0
  %1734 = vmatmul.mubr.f32.gmra.mxu0 %v1655
  %v1735 = vpop.f32.mrf.mxu0
  %v1736 = vadd.f32 0.0, %v1735
  %v1737 = vpop.f32.mrf.mxu0
  %v1738 = vadd.f32 0.0, %v1737
  %1739 = vdwg.mxu0
  %1740 = vmatprep.subr.mxu0 0.0
  %1741 = vmatpush1.msra.mxu0 0.0
  %1742 = vmatprep.subr.mxu0 0.0
  %1743 = vmatpush1.msra.mxu0 0.0
  %1744 = vmatprep.subr.mxu0 0.0
  %1745 = vmatpush1.msra.mxu0 0.0
  %1746 = vmatprep.subr.mxu0 0.0
  %1747 = vmatpush1.msra.mxu0 0.0
  %1748 = vmatprep.subr.mxu0 0.0
  %1749 = vmatpush1.msra.mxu0 0.0
  %1750 = vmatprep.subr.mxu0 0.0
  %1751 = vmatpush1.msra.mxu0 0.0
  %1752 = vmatprep.subr.mxu0 0.0
  %1753 = vmatpush1.msra.mxu0 0.0
  %1754 = vmatprep.subr.mxu0 0.0
  %1755 = vmatpush1.msra.mxu0 0.0
  %1756 = vmatprep.subr.mxu0 0.0
  %1757 = vmatpush1.msra.mxu0 0.0
  %1758 = vmatprep.subr.mxu0 0.0
  %1759 = vmatpush1.msra.mxu0 0.0
  %1760 = vmatprep.subr.mxu0 0.0
  %1761 = vmatpush1.msra.mxu0 0.0
  %1762 = vmatprep.subr.mxu0 0.0
  %1763 = vmatpush1.msra.mxu0 0.0
  %1764 = vmatprep.subr.mxu0 0.0
  %1765 = vmatpush1.msra.mxu0 0.0
  %1766 = vmatprep.subr.mxu0 0.0
  %1767 = vmatpush1.msra.mxu0 0.0
  %1768 = vmatprep.subr.mxu0 %v1644
  %1769 = vmatpush1.msra.mxu0 %v1643
  %1770 = vmatprep.subr.mxu0 %v1637
  %1771 = vmatpush1.msra.mxu0 %v1636
  %1772 = vmatprep.subr.mxu0 0.0
  %1773 = vmatpush2.msra.mxu0 0.0
  %1774 = vmatprep.subr.mxu0 0.0
  %1775 = vmatpush2.msra.mxu0 0.0
  %1776 = vmatprep.subr.mxu0 0.0
  %1777 = vmatpush2.msra.mxu0 0.0
  %1778 = vmatprep.subr.mxu0 0.0
  %1779 = vmatpush2.msra.mxu0 0.0
  %1780 = vmatprep.subr.mxu0 0.0
  %1781 = vmatpush2.msra.mxu0 0.0
  %1782 = vmatprep.subr.mxu0 0.0
  %1783 = vmatpush2.msra.mxu0 0.0
  %1784 = vmatprep.subr.mxu0 0.0
  %1785 = vmatpush2.msra.mxu0 0.0
  %1786 = vmatprep.subr.mxu0 0.0
  %1787 = vmatpush2.msra.mxu0 0.0
  %1788 = vmatprep.subr.mxu0 0.0
  %1789 = vmatpush2.msra.mxu0 0.0
  %1790 = vmatprep.subr.mxu0 0.0
  %1791 = vmatpush2.msra.mxu0 0.0
  %1792 = vmatprep.subr.mxu0 0.0
  %1793 = vmatpush2.msra.mxu0 0.0
  %1794 = vmatprep.subr.mxu0 0.0
  %1795 = vmatpush2.msra.mxu0 0.0
  %1796 = vmatprep.subr.mxu0 0.0
  %1797 = vmatpush2.msra.mxu0 0.0
  %1798 = vmatprep.subr.mxu0 0.0
  %1799 = vmatpush2.msra.mxu0 0.0
  %1800 = vmatprep.subr.mxu0 0.0
  %1801 = vmatpush2.msra.mxu0 0.0
  %1802 = vmatprep.subr.mxu0 0.0
  %1803 = vmatpush2.msra.mxu0 0.0
  %1804 = vmatprep.mubr.f32.mxu0 0.0
  %1805 = vmatmul.mubr.f32.gmra.mxu0 %v1649
  %v1806 = vpop.f32.mrf.mxu0
  %v1807 = vadd.f32 0.0, %v1806
  %v1808 = vpop.f32.mrf.mxu0
  %v1809 = vadd.f32 0.0, %v1808
  %1810 = vmatprep.mubr.f32.mxu0 0.0
  %1811 = vmatmul.mubr.f32.gmra.mxu0 %v1652
  %v1812 = vpop.f32.mrf.mxu0
  %v1813 = vadd.f32 0.0, %v1812
  %v1814 = vpop.f32.mrf.mxu0
  %v1815 = vadd.f32 0.0, %v1814
  %1816 = vmatprep.mubr.f32.mxu0 0.0
  %1817 = vmatmul.mubr.f32.gmra.mxu0 %v1655
  %v1818 = vpop.f32.mrf.mxu0
  %v1819 = vadd.f32 0.0, %v1818
  %v1820 = vpop.f32.mrf.mxu0
  %v1821 = vadd.f32 0.0, %v1820
  %1822 = vdwg.mxu0
  %1823 = vmatprep.subr.mxu0 0.0
  %1824 = vmatpush1.msra.mxu0 0.0
  %1825 = vmatprep.subr.mxu0 0.0
  %1826 = vmatpush1.msra.mxu0 0.0
  %1827 = vmatprep.subr.mxu0 0.0
  %1828 = vmatpush1.msra.mxu0 0.0
  %1829 = vmatprep.subr.mxu0 0.0
  %1830 = vmatpush1.msra.mxu0 0.0
  %1831 = vmatprep.subr.mxu0 0.0
  %1832 = vmatpush1.msra.mxu0 0.0
  %1833 = vmatprep.subr.mxu0 0.0
  %1834 = vmatpush1.msra.mxu0 0.0
  %1835 = vmatprep.subr.mxu0 0.0
  %1836 = vmatpush1.msra.mxu0 0.0
  %1837 = vmatprep.subr.mxu0 0.0
  %1838 = vmatpush1.msra.mxu0 0.0
  %1839 = vmatprep.subr.mxu0 0.0
  %1840 = vmatpush1.msra.mxu0 0.0
  %1841 = vmatprep.subr.mxu0 0.0
  %1842 = vmatpush1.msra.mxu0 0.0
  %1843 = vmatprep.subr.mxu0 0.0
  %1844 = vmatpush1.msra.mxu0 0.0
  %1845 = vmatprep.subr.mxu0 0.0
  %1846 = vmatpush1.msra.mxu0 0.0
  %1847 = vmatprep.subr.mxu0 0.0
  %1848 = vmatpush1.msra.mxu0 0.0
  %1849 = vmatprep.subr.mxu0 0.0
  %1850 = vmatpush1.msra.mxu0 0.0
  %1851 = vmatprep.subr.mxu0 %v1646
  %1852 = vmatpush1.msra.mxu0 %v1645
  %1853 = vmatprep.subr.mxu0 %v1639
  %1854 = vmatpush1.msra.mxu0 %v1638
  %1855 = vmatprep.subr.mxu0 0.0
  %1856 = vmatpush2.msra.mxu0 0.0
  %1857 = vmatprep.subr.mxu0 0.0
  %1858 = vmatpush2.msra.mxu0 0.0
  %1859 = vmatprep.subr.mxu0 0.0
  %1860 = vmatpush2.msra.mxu0 0.0
  %1861 = vmatprep.subr.mxu0 0.0
  %1862 = vmatpush2.msra.mxu0 0.0
  %1863 = vmatprep.subr.mxu0 0.0
  %1864 = vmatpush2.msra.mxu0 0.0
  %1865 = vmatprep.subr.mxu0 0.0
  %1866 = vmatpush2.msra.mxu0 0.0
  %1867 = vmatprep.subr.mxu0 0.0
  %1868 = vmatpush2.msra.mxu0 0.0
  %1869 = vmatprep.subr.mxu0 0.0
  %1870 = vmatpush2.msra.mxu0 0.0
  %1871 = vmatprep.subr.mxu0 0.0
  %1872 = vmatpush2.msra.mxu0 0.0
  %1873 = vmatprep.subr.mxu0 0.0
  %1874 = vmatpush2.msra.mxu0 0.0
  %1875 = vmatprep.subr.mxu0 0.0
  %1876 = vmatpush2.msra.mxu0 0.0
  %1877 = vmatprep.subr.mxu0 0.0
  %1878 = vmatpush2.msra.mxu0 0.0
  %1879 = vmatprep.subr.mxu0 0.0
  %1880 = vmatpush2.msra.mxu0 0.0
  %1881 = vmatprep.subr.mxu0 0.0
  %1882 = vmatpush2.msra.mxu0 0.0
  %1883 = vmatprep.subr.mxu0 0.0
  %1884 = vmatpush2.msra.mxu0 0.0
  %1885 = vmatprep.subr.mxu0 0.0
  %1886 = vmatpush2.msra.mxu0 0.0
  %1887 = vmatprep.mubr.f32.mxu0 0.0
  %1888 = vmatmul.mubr.f32.gmra.mxu0 %v1649
  %v1889 = vpop.f32.mrf.mxu0
  %v1890 = vadd.f32 0.0, %v1889
  %v1891 = vpop.f32.mrf.mxu0
  %v1892 = vadd.f32 0.0, %v1891
  %1893 = vmatprep.mubr.f32.mxu0 0.0
  %1894 = vmatmul.mubr.f32.gmra.mxu0 %v1652
  %v1895 = vpop.f32.mrf.mxu0
  %v1896 = vadd.f32 0.0, %v1895
  %v1897 = vpop.f32.mrf.mxu0
  %v1898 = vadd.f32 0.0, %v1897
  %1899 = vmatprep.mubr.f32.mxu0 0.0
  %1900 = vmatmul.mubr.f32.gmra.mxu0 %v1655
  %v1901 = vpop.f32.mrf.mxu0
  %v1902 = vadd.f32 0.0, %v1901
  %v1903 = vpop.f32.mrf.mxu0
  %v1904 = vadd.f32 0.0, %v1903
  %1905 = vdwg.mxu0
  %1906 = vmatprep.subr.mxu0 0.0
  %1907 = vmatpush1.msra.mxu0 0.0
  %1908 = vmatprep.subr.mxu0 0.0
  %1909 = vmatpush1.msra.mxu0 0.0
  %1910 = vmatprep.subr.mxu0 0.0
  %1911 = vmatpush1.msra.mxu0 0.0
  %1912 = vmatprep.subr.mxu0 0.0
  %1913 = vmatpush1.msra.mxu0 0.0
  %1914 = vmatprep.subr.mxu0 0.0
  %1915 = vmatpush1.msra.mxu0 0.0
  %1916 = vmatprep.subr.mxu0 0.0
  %1917 = vmatpush1.msra.mxu0 0.0
  %1918 = vmatprep.subr.mxu0 0.0
  %1919 = vmatpush1.msra.mxu0 0.0
  %1920 = vmatprep.subr.mxu0 0.0
  %1921 = vmatpush1.msra.mxu0 0.0
  %1922 = vmatprep.subr.mxu0 0.0
  %1923 = vmatpush1.msra.mxu0 0.0
  %1924 = vmatprep.subr.mxu0 0.0
  %1925 = vmatpush1.msra.mxu0 0.0
  %1926 = vmatprep.subr.mxu0 0.0
  %1927 = vmatpush1.msra.mxu0 0.0
  %1928 = vmatprep.subr.mxu0 0.0
  %1929 = vmatpush1.msra.mxu0 0.0
  %1930 = vmatprep.subr.mxu0 0.0
  %1931 = vmatpush1.msra.mxu0 0.0
  %1932 = vmatprep.subr.mxu0 0.0
  %1933 = vmatpush1.msra.mxu0 0.0
  %1934 = vmatprep.subr.mxu0 0.0
  %1935 = vmatpush1.msra.mxu0 %v1647
  %1936 = vmatprep.subr.mxu0 0.0
  %1937 = vmatpush1.msra.mxu0 %v1640
  %1938 = vmatprep.subr.mxu0 0.0
  %1939 = vmatpush2.msra.mxu0 0.0
  %1940 = vmatprep.subr.mxu0 0.0
  %1941 = vmatpush2.msra.mxu0 0.0
  %1942 = vmatprep.subr.mxu0 0.0
  %1943 = vmatpush2.msra.mxu0 0.0
  %1944 = vmatprep.subr.mxu0 0.0
  %1945 = vmatpush2.msra.mxu0 0.0
  %1946 = vmatprep.subr.mxu0 0.0
  %1947 = vmatpush2.msra.mxu0 0.0
  %1948 = vmatprep.subr.mxu0 0.0
  %1949 = vmatpush2.msra.mxu0 0.0
  %1950 = vmatprep.subr.mxu0 0.0
  %1951 = vmatpush2.msra.mxu0 0.0
  %1952 = vmatprep.subr.mxu0 0.0
  %1953 = vmatpush2.msra.mxu0 0.0
  %1954 = vmatprep.subr.mxu0 0.0
  %1955 = vmatpush2.msra.mxu0 0.0
  %1956 = vmatprep.subr.mxu0 0.0
  %1957 = vmatpush2.msra.mxu0 0.0
  %1958 = vmatprep.subr.mxu0 0.0
  %1959 = vmatpush2.msra.mxu0 0.0
  %1960 = vmatprep.subr.mxu0 0.0
  %1961 = vmatpush2.msra.mxu0 0.0
  %1962 = vmatprep.subr.mxu0 0.0
  %1963 = vmatpush2.msra.mxu0 0.0
  %1964 = vmatprep.subr.mxu0 0.0
  %1965 = vmatpush2.msra.mxu0 0.0
  %1966 = vmatprep.subr.mxu0 0.0
  %1967 = vmatpush2.msra.mxu0 0.0
  %1968 = vmatprep.subr.mxu0 0.0
  %1969 = vmatpush2.msra.mxu0 0.0
  %1970 = vmatprep.mubr.f32.mxu0 0.0
  %1971 = vmatmul.mubr.f32.gmra.mxu0 %v1649
  %v1972 = vpop.f32.mrf.mxu0
  %v1973 = vadd.f32 0.0, %v1972
  %v1974 = vpop.f32.mrf.mxu0
  %1975 = vmatprep.mubr.f32.mxu0 0.0
  %1976 = vmatmul.mubr.f32.gmra.mxu0 %v1652
  %v1977 = vpop.f32.mrf.mxu0
  %v1978 = vadd.f32 0.0, %v1977
  %v1979 = vpop.f32.mrf.mxu0
  %1980 = vmatprep.mubr.f32.mxu0 0.0
  %1981 = vmatmul.mubr.f32.gmra.mxu0 %v1655
  %v1982 = vpop.f32.mrf.mxu0
  %v1983 = vadd.f32 0.0, %v1982
  %v1984 = vpop.f32.mrf.mxu0
  %1985 = vdwg.mxu0
  %v1986 = vmul.f32 %v1724, %v1216
  %v1987 = vmul.f32 %v1726, %v1218
  %v1988 = vmul.f32 %v1807, %v1257
  %v1989 = vmul.f32 %v1809, %v1259
  %v1990 = vmul.f32 %v1890, %v1298
  %v1991 = vmul.f32 %v1892, %v1300
  %v1992 = vmul.f32 %v1973, %v1339
  %v2000 = vrot.slane %v1341, 2
  %v2001 = vrot.slane %v1380, 2
  %v2002 = vrot.slane %v1382, 2
  %v2003 = vrot.slane %v1421, 2
  %v2004 = vrot.slane %v1423, 2
  %v2005 = vrot.slane %v1462, 2
  %v2006 = vrot.slane %v1464, 2
  %v2014 = vmul.f32 %v1724, %v2000
  %v2015 = vmul.f32 %v1726, %v2001
  %v2016 = vmul.f32 %v1807, %v2002
  %v2017 = vmul.f32 %v1809, %v2003
  %v2018 = vmul.f32 %v1890, %v2004
  %v2019 = vmul.f32 %v1892, %v2005
  %v2020 = vmul.f32 %v1973, %v2006
  %v2021 = vmul.f32 %v1730, %v2000
  %v2022 = vmul.f32 %v1732, %v2001
  %v2023 = vmul.f32 %v1813, %v2002
  %v2024 = vmul.f32 %v1815, %v2003
  %v2025 = vmul.f32 %v1896, %v2004
  %v2026 = vmul.f32 %v1898, %v2005
  %v2027 = vmul.f32 %v1978, %v2006
  %vm2042 = vcmask 1041408
  %v2043 = vrot.slane %v2014, 6
  %v2044 = vrot.slane %v2021, 6
  %v2045 = vsel %vm2042, %v2043, %v2044
  %v2046 = vrot.slane %v2015, 6
  %v2047 = vrot.slane %v2022, 6
  %v2048 = vsel %vm2042, %v2046, %v2047
  %v2049 = vrot.slane %v2016, 6
  %v2050 = vrot.slane %v2023, 6
  %v2051 = vsel %vm2042, %v2049, %v2050
  %v2052 = vrot.slane %v2017, 6
  %v2053 = vrot.slane %v2024, 6
  %v2054 = vsel %vm2042, %v2052, %v2053
  %v2055 = vrot.slane %v2018, 6
  %v2056 = vrot.slane %v2025, 6
  %v2057 = vsel %vm2042, %v2055, %v2056
  %v2058 = vrot.slane %v2019, 6
  %v2059 = vrot.slane %v2026, 6
  %v2060 = vsel %vm2042, %v2058, %v2059
  %v2061 = vrot.slane %v2020, 6
  %v2062 = vrot.slane %v2027, 6
  %v2063 = vsel %vm2042, %v2061, %v2062
  %v2071 = vadd.f32 %v1986, %v2045
  %v2072 = vadd.f32 %v1987, %v2048
  %v2073 = vadd.f32 %v1988, %v2051
  %v2074 = vadd.f32 %v1989, %v2054
  %v2075 = vadd.f32 %v1990, %v2057
  %v2076 = vadd.f32 %v1991, %v2060
  %v2077 = vadd.f32 %v1992, %v2063
  %v2085 = vrot.slane %v1503, 4
  %v2086 = vrot.slane %v1505, 4
  %v2087 = vrot.slane %v1544, 4
  %v2088 = vrot.slane %v1546, 4
  %v2089 = vrot.slane %v1585, 4
  %v2090 = vrot.slane %v1587, 4
  %v2091 = vrot.slane %v1626, 4
  %v2099 = vmul.f32 %v1730, %v2085
  %v2100 = vmul.f32 %v1732, %v2086
  %v2101 = vmul.f32 %v1813, %v2087
  %v2102 = vmul.f32 %v1815, %v2088
  %v2103 = vmul.f32 %v1896, %v2089
  %v2104 = vmul.f32 %v1898, %v2090
  %v2105 = vmul.f32 %v1978, %v2091
  %v2106 = vmul.f32 %v1736, %v2085
  %v2107 = vmul.f32 %v1738, %v2086
  %v2108 = vmul.f32 %v1819, %v2087
  %v2109 = vmul.f32 %v1821, %v2088
  %v2110 = vmul.f32 %v1902, %v2089
  %v2111 = vmul.f32 %v1904, %v2090
  %v2112 = vmul.f32 %v1983, %v2091
  %vm2127 = vcmask 1043456
  %v2128 = vrot.slane %v2099, 4
  %v2129 = vrot.slane %v2106, 4
  %v2130 = vsel %vm2127, %v2128, %v2129
  %v2131 = vrot.slane %v2100, 4
  %v2132 = vrot.slane %v2107, 4
  %v2133 = vsel %vm2127, %v2131, %v2132
  %v2134 = vrot.slane %v2101, 4
  %v2135 = vrot.slane %v2108, 4
  %v2136 = vsel %vm2127, %v2134, %v2135
  %v2137 = vrot.slane %v2102, 4
  %v2138 = vrot.slane %v2109, 4
  %v2139 = vsel %vm2127, %v2137, %v2138
  %v2140 = vrot.slane %v2103, 4
  %v2141 = vrot.slane %v2110, 4
  %v2142 = vsel %vm2127, %v2140, %v2141
  %v2143 = vrot.slane %v2104, 4
  %v2144 = vrot.slane %v2111, 4
  %v2145 = vsel %vm2127, %v2143, %v2144
  %v2146 = vrot.slane %v2105, 4
  %v2147 = vrot.slane %v2112, 4
  %v2148 = vsel %vm2127, %v2146, %v2147
  %v2156 = vadd.f32 %v2071, %v2130
  %v2157 = vadd.f32 %v2072, %v2133
  %v2158 = vadd.f32 %v2073, %v2136
  %v2159 = vadd.f32 %v2074, %v2139
  %v2160 = vadd.f32 %v2075, %v2142
  %v2161 = vadd.f32 %v2076, %v2145
  %v2162 = vadd.f32 %v2077, %v2148
  %v2170 = vrot.slane %v1736, 2
  %v2171 = vrot.slane %v1738, 2
  %v2172 = vrot.slane %v1819, 2
  %v2173 = vrot.slane %v1821, 2
  %v2174 = vrot.slane %v1902, 2
  %v2175 = vrot.slane %v1904, 2
  %v2176 = vrot.slane %v1983, 2
  %v2184 = vadd.f32 %v2156, %v2170
  %v2185 = vadd.f32 %v2157, %v2171
  %v2186 = vadd.f32 %v2158, %v2172
  %v2187 = vadd.f32 %v2159, %v2173
  %v2188 = vadd.f32 %v2160, %v2174
  %v2189 = vadd.f32 %v2161, %v2175
  %v2190 = vadd.f32 %v2162, %v2176
  %2191 = vst [vmem:[%s4] sm:$0x3f] %v2184
  %2192 = vst [vmem:[%s4 + $0x8] sm:$0x3f] %v2185
  %2193 = vst [vmem:[%s4 + $0x10] sm:$0x3f] %v2186
  %2194 = vst [vmem:[%s4 + $0x18] sm:$0x3f] %v2187
  %2195 = vst [vmem:[%s4 + $0x20] sm:$0x3f] %v2188
  %2196 = vst [vmem:[%s4 + $0x28] sm:$0x3f] %v2189
  %2197 = vst [vmem:[%s4 + $0x30] sm:$0x3f] %v2190
  // Predicated region
  $region18: #{mano_forward.1} parent=0 // pred_check
    _
  $region19: #{mano_forward.1} parent=0 // pred_check_branch
    %2199 = sbr.rel (0) target = $region21
  $region20: #{mano_forward.1} parent=0 // pred_region
    _
  $region21: #{mano_forward.1} parent=0 // pred_fallthru
    _
  // Predicated region
  $region22: #{mano_forward.1} parent=0 // pred_check
    _
  $region23: #{mano_forward.1} parent=0 // pred_check_branch
    %2201 = sbr.rel (0) target = $region25
  $region24: #{mano_forward.1} parent=0 // pred_region
    _
  $region25: #{mano_forward.1} parent=0 // pred_fallthru
    _

</llo_original>
